<compile_context>
chip_gen: v5e
topology: v5e:2x2
jax: 0.10.0
libtpu: 0.0.40
codegen_flags: <defaults>
</compile_context>

<pallas_src>
import functools
import math

import jax
import jax.numpy as jnp
from jax.experimental import pallas as pl
from jax.experimental.pallas import tpu as pltpu

# ----- small synthetic BERT config (lane-friendly: H, INTER multiples of 128) -----
VOCAB = 128
MAX_POS = 64
TYPE_VOCAB = 2
HIDDEN = 128
N_LAYERS = 2
N_HEADS = 4
HEAD_DIM = HIDDEN // N_HEADS
INTER = 256
SEQ = 8
BATCH = 2
LN_EPS = 1e-12


def _layernorm(x, g, b):
    mu = jnp.mean(x, axis=-1, keepdims=True)
    var = jnp.mean((x - mu) ** 2, axis=-1, keepdims=True)
    return (x - mu) * jax.lax.rsqrt(var + LN_EPS) * g + b


def _gelu(x):
    # TODO(synk): HF BERT uses exact erf-GELU; tanh approximation is used
    # because lax.erf has no guaranteed Mosaic lowering.
    c = math.sqrt(2.0 / math.pi)
    return 0.5 * x * (1.0 + jnp.tanh(c * (x + 0.044715 * x * x * x)))


# ---------------- fused, layer-pipelined Pallas kernel ----------------

def bert_layer_kernel(emb_ref, eg_ref, eb_ref,
                      wqkv_ref, bqkv_ref, wo_ref, bo_ref, g1_ref, b1_ref,
                      wi_ref, bi_ref, wo2_ref, bo2_ref, g2_ref, b2_ref,
                      out_ref, h_ref, *, reduce_mean):
    l = pl.program_id(1)                       # layer axis (last, 'arbitrary')

    # Layer 0 of each batch block: embedding LayerNorm into the resident
    # hidden-state scratch (stays in VMEM across the whole layer axis).
    @pl.when(l == 0)
    def _():
        h_ref[...] = _layernorm(emb_ref[...], eg_ref[...], eb_ref[...])

    h = h_ref[...]                             # (S, H) f32
    hb = h.astype(jnp.bfloat16)

    # ---- self-attention ----
    # Head-major fused QKV projection: one batched bf16 MXU matmul whose
    # leading axis enumerates (q|k|v, head); q/k/v come out as free
    # leading-axis slices -- no per-head lane slicing, no lane reshapes.
    hb3 = jnp.broadcast_to(hb[None], (3 * N_HEADS, SEQ, HIDDEN))
    qkv = jnp.einsum('nsh,nhd->nsd', hb3, wqkv_ref[...],
                     preferred_element_type=jnp.float32) + bqkv_ref[...]
    q = qkv[:N_HEADS]                          # (NH,S,HD); 1/sqrt(HD) folded into Wq/bq
    k = qkv[N_HEADS:2 * N_HEADS]
    v = qkv[2 * N_HEADS:]

    s = jnp.einsum('hqd,hkd->hqk',
                   q.astype(jnp.bfloat16), k.astype(jnp.bfloat16),
                   preferred_element_type=jnp.float32)        # (NH, S, S)
    s = s - jnp.max(s, axis=-1, keepdims=True)                # softmax in f32
    p = jnp.exp(s)
    # approx reciprocal on the EUP; use approx=False for tight torch allclose.
    p = p * pl.reciprocal(jnp.sum(p, axis=-1, keepdims=True), approx=True)
    ctx = jnp.einsum('hqk,hkd->hqd',
                     p.astype(jnp.bfloat16), v.astype(jnp.bfloat16),
                     preferred_element_type=jnp.float32)      # (NH, S, HD)
    # sum_h ctx_h @ Wo_h == concat(heads) @ Wo, without a lane concat.
    attn = jnp.einsum('hqd,hdm->hqm', ctx.astype(jnp.bfloat16), wo_ref[...],
                      preferred_element_type=jnp.float32)     # (NH, S, H)
    attn = jnp.sum(attn, axis=0) + bo_ref[...]
    h1 = _layernorm(h + attn, g1_ref[...], b1_ref[...])

    # ---- feed-forward (bf16 MXU, f32 accumulate / elementwise) ----
    f = jnp.dot(h1.astype(jnp.bfloat16), wi_ref[...],
                preferred_element_type=jnp.float32) + bi_ref[...]
    f = _gelu(f)
    f = jnp.dot(f.astype(jnp.bfloat16), wo2_ref[...],
                preferred_element_type=jnp.float32) + bo2_ref[...]
    h_new = _layernorm(h1 + f, g2_ref[...], b2_ref[...])
    h_ref[...] = h_new

    @pl.when(l == pl.num_programs(1) - 1)
    def _():
        if reduce_mean:
            # mean over seq -> L2-normalize (clamp 1e-8) -> NaN->0, as in torch.
            m = jnp.mean(h_new, axis=0, keepdims=True)        # (1, H)
            n = jnp.sqrt(jnp.sum(m * m, axis=-1, keepdims=True))
            m = m / jnp.maximum(n, 1e-8)
            out_ref[...] = jnp.where(jnp.isnan(m), 0.0, m).reshape(1, 1, HIDDEN)
        else:
            out_ref[...] = h_new


# ---------------- parameters ----------------

def init_params(key):
    def nrm(k, shape):
        return 0.02 * jax.random.normal(k, shape, dtype=jnp.float32)

    keys = jax.random.split(key, 9)
    L, H, I = N_LAYERS, HIDDEN, INTER
    return {
        'word_emb': nrm(keys[0], (VOCAB, H)),
        'pos_emb': nrm(keys[1], (MAX_POS, H)),
        'type_emb': nrm(keys[2], (TYPE_VOCAB, H)),
        'emb_ln_g': jnp.ones((1, H), jnp.float32),
        'emb_ln_b': jnp.zeros((1, H), jnp.float32),
        'wq': nrm(keys[3], (L, H, H)), 'bq': jnp.zeros((L, H), jnp.float32),
        'wk': nrm(keys[4], (L, H, H)), 'bk': jnp.zeros((L, H), jnp.float32),
        'wv': nrm(keys[5], (L, H, H)), 'bv': jnp.zeros((L, H), jnp.float32),
        'wo': nrm(keys[6], (L, H, H)), 'bo': jnp.zeros((L, H), jnp.float32),
        'ln1_g': jnp.ones((L, H), jnp.float32), 'ln1_b': jnp.zeros((L, H), jnp.float32),
        'wi': nrm(keys[7], (L, H, I)), 'bi': jnp.zeros((L, I), jnp.float32),
        'wo2': nrm(keys[8], (L, I, H)), 'bo2': jnp.zeros((L, H), jnp.float32),
        'ln2_g': jnp.ones((L, H), jnp.float32), 'ln2_b': jnp.zeros((L, H), jnp.float32),
    }


def pack_params(p):
    """Pack standard BERT layer weights into the kernel layout:
       Q/K/V fused head-major (L, 3*NH, H, HD) bf16 with 1/sqrt(HD) folded
       into Wq/bq; Wo head-major (L, NH, HD, H) bf16; FFN weights bf16;
       biases / LayerNorm params stay f32 and lane-major."""
    L, H, I, NH, HD = N_LAYERS, HIDDEN, INTER, N_HEADS, HEAD_DIM
    scale = 1.0 / math.sqrt(HD)

    def head_major(w):                        # (L, H, H) -> (L, NH, H, HD)
        return jnp.transpose(w.reshape(L, H, NH, HD), (0, 2, 1, 3))

    wqkv = jnp.concatenate([head_major(p['wq']) * scale,
                            head_major(p['wk']),
                            head_major(p['wv'])], axis=1)       # (L, 3NH, H, HD)
    bqkv = jnp.concatenate([p['bq'].reshape(L, NH, 1, HD) * scale,
                            p['bk'].reshape(L, NH, 1, HD),
                            p['bv'].reshape(L, NH, 1, HD)], axis=1)
    return {
        'emb_ln_g': p['emb_ln_g'], 'emb_ln_b': p['emb_ln_b'],
        'wqkv': wqkv.astype(jnp.bfloat16),
        'bqkv': bqkv,
        'wo': p['wo'].reshape(L, NH, HD, H).astype(jnp.bfloat16),
        'bo': p['bo'].reshape(L, 1, H),
        'ln1_g': p['ln1_g'].reshape(L, 1, H), 'ln1_b': p['ln1_b'].reshape(L, 1, H),
        'wi': p['wi'].astype(jnp.bfloat16), 'bi': p['bi'].reshape(L, 1, I),
        'wo2': p['wo2'].astype(jnp.bfloat16), 'bo2': p['bo2'].reshape(L, 1, H),
        'ln2_g': p['ln2_g'].reshape(L, 1, H), 'ln2_b': p['ln2_b'].reshape(L, 1, H),
    }


# ---------------- forward ----------------

def bert_forward(x_sb, params, reduction='none'):
    # x_sb: (S, B) int32 token ids -> (B, S), as in the module's x.transpose(0,1).
    x_bs = x_sb.T
    b, s = x_bs.shape
    assert (b, s) == (BATCH, SEQ)
    H, I, NH, HD, L = HIDDEN, INTER, N_HEADS, HEAD_DIM, N_LAYERS

    kp = pack_params(params)

    # Embedding gathers stay in plain JAX (tiny vocab lookup); everything
    # downstream is one fused, layer-pipelined Pallas kernel.
    tok = jnp.take(params['word_emb'], x_bs, axis=0)                  # (B,S,H)
    pos = params['pos_emb'][:s][None, :, :]
    typ = params['type_emb'][0][None, None, :]                        # type ids == 0
    emb = (tok + pos + typ).reshape(b * s, H).astype(jnp.float32)

    reduce_mean = (reduction == 'mean')

    per_batch = lambda bb, ll: (bb, 0)
    const2 = lambda bb, ll: (0, 0)
    layer3 = lambda bb, ll: (ll, 0, 0)
    layer4 = lambda bb, ll: (ll, 0, 0, 0)
    sq = pl.Squeezed()

    in_specs = [
        pl.BlockSpec((SEQ, H), per_batch),                 # emb (per-batch rows)
        pl.BlockSpec((1, H), const2),                      # emb_ln_g
        pl.BlockSpec((1, H), const2),                      # emb_ln_b
        pl.BlockSpec((sq, 3 * NH, H, HD), layer4),         # wqkv   (bf16, streamed)
        pl.BlockSpec((sq, 3 * NH, 1, HD), layer4),         # bqkv
        pl.BlockSpec((sq, NH, HD, H), layer4),             # wo     (bf16, streamed)
        pl.BlockSpec((sq, 1, H), layer3),                  # bo
        pl.BlockSpec((sq, 1, H), layer3),                  # ln1_g
        pl.BlockSpec((sq, 1, H), layer3),                  # ln1_b
        pl.BlockSpec((sq, H, I), layer3),                  # wi     (bf16, streamed)
        pl.BlockSpec((sq, 1, I), layer3),                  # bi
        pl.BlockSpec((sq, I, H), layer3),                  # wo2    (bf16, streamed)
        pl.BlockSpec((sq, 1, H), layer3),                  # bo2
        pl.BlockSpec((sq, 1, H), layer3),                  # ln2_g
        pl.BlockSpec((sq, 1, H), layer3),                  # ln2_b
    ]
    args = (emb, kp['emb_ln_g'], kp['emb_ln_b'],
            kp['wqkv'], kp['bqkv'], kp['wo'], kp['bo'], kp['ln1_g'], kp['ln1_b'],
            kp['wi'], kp['bi'], kp['wo2'], kp['bo2'], kp['ln2_g'], kp['ln2_b'])

    if reduce_mean:
        out_shape = jax.ShapeDtypeStruct((b, 1, H), jnp.float32)
        out_spec = pl.BlockSpec((1, 1, H), lambda bb, ll: (bb, 0, 0))
        out_bytes = b * H * 4
    else:
        out_shape = jax.ShapeDtypeStruct((b * s, H), jnp.float32)
        out_spec = pl.BlockSpec((SEQ, H), per_batch)
        out_bytes = b * s * H * 4

    # Advisory cost estimate so XLA can schedule around the custom call.
    flops = b * L * (2 * (3 * NH) * SEQ * H * HD            # QKV projection
                     + 2 * 2 * NH * SEQ * SEQ * HD          # scores + context
                     + 2 * NH * SEQ * HD * H                # output projection
                     + 2 * 2 * SEQ * H * I)                 # FFN
    transcendentals = b * L * (NH * SEQ * SEQ + SEQ * I)
    weight_bytes = L * 2 * (3 * H * H + H * H + 2 * H * I)  # bf16, refetched per batch
    bytes_accessed = b * weight_bytes + emb.size * 4 + out_bytes

    out = pl.pallas_call(
        functools.partial(bert_layer_kernel, reduce_mean=reduce_mean),
        out_shape=out_shape,
        grid_spec=pltpu.PrefetchScalarGridSpec(
            num_scalar_prefetch=0,
            grid=(BATCH, N_LAYERS),              # batch parallel, layer axis last
            in_specs=in_specs,
            out_specs=out_spec,
            scratch_shapes=[pltpu.VMEM((SEQ, H), jnp.float32)]),   # resident hidden state
        compiler_params=pltpu.CompilerParams(
            dimension_semantics=("parallel", "arbitrary"),
            vmem_limit_bytes=32 * 1024 * 1024),
        cost_estimate=pl.CostEstimate(flops=flops,
                                      transcendentals=transcendentals,
                                      bytes_accessed=bytes_accessed),
    )(*args)

    if reduce_mean:
        return out.reshape(b, H)                                     # (B, H)
    return jnp.transpose(out.reshape(b, s, H), (1, 0, 2))            # (S, B, H)


if __name__ == "__main__":
    key = jax.random.PRNGKey(0)
    pkey, xkey = jax.random.split(key)
    params = init_params(pkey)
    x = jax.random.randint(xkey, (SEQ, BATCH), 0, VOCAB, dtype=jnp.int32)

    out_none = jax.block_until_ready(bert_forward(x, params, reduction='none'))
    out_mean = jax.block_until_ready(bert_forward(x, params, reduction='mean'))

    assert out_none.shape == (SEQ, BATCH, HIDDEN), out_none.shape
    assert out_mean.shape == (BATCH, HIDDEN), out_mean.shape
    assert bool(jnp.all(jnp.isfinite(out_none)))
    assert bool(jnp.all(jnp.isfinite(out_mean)))
    print("KERNEL_OK")
</pallas_src>

<mosaic_0001>
module attributes {stable_mosaic.version = 11 : i64} {
  func.func @bert_layer_kernel(%arg0: i32, %arg1: i32, %arg2: memref<8x128xf32, #tpu.memory_space<vmem>>, %arg3: memref<1x128xf32, #tpu.memory_space<vmem>>, %arg4: memref<1x128xf32, #tpu.memory_space<vmem>>, %arg5: memref<1x12x128x32xbf16, #tpu.memory_space<vmem>>, %arg6: memref<1x12x1x32xf32, #tpu.memory_space<vmem>>, %arg7: memref<1x4x32x128xbf16, #tpu.memory_space<vmem>>, %arg8: memref<1x1x128xf32, #tpu.memory_space<vmem>>, %arg9: memref<1x1x128xf32, #tpu.memory_space<vmem>>, %arg10: memref<1x1x128xf32, #tpu.memory_space<vmem>>, %arg11: memref<1x128x256xbf16, #tpu.memory_space<vmem>>, %arg12: memref<1x1x256xf32, #tpu.memory_space<vmem>>, %arg13: memref<1x256x128xbf16, #tpu.memory_space<vmem>>, %arg14: memref<1x1x128xf32, #tpu.memory_space<vmem>>, %arg15: memref<1x1x128xf32, #tpu.memory_space<vmem>>, %arg16: memref<1x1x128xf32, #tpu.memory_space<vmem>>, %arg17: memref<8x128xf32, #tpu.memory_space<vmem>>, %arg18: memref<8x128xf32, #tpu.memory_space<vmem>>) attributes {dimension_semantics = [#tpu.dimension_semantics<parallel>, #tpu.dimension_semantics<arbitrary>], iteration_bounds = array<i64: 2, 2>, scalar_prefetch = 0 : i64, scratch_operands = 1 : i64, tpu.core_type = #tpu.core_type<tc>, window_params = [{transform_indices = @transform_0, window_bounds = array<i64: 8, 128>}, {pipeline_mode = #tpu.pipeline_mode<synchronous>, transform_indices = @transform_1, window_bounds = array<i64: 1, 128>}, {pipeline_mode = #tpu.pipeline_mode<synchronous>, transform_indices = @transform_2, window_bounds = array<i64: 1, 128>}, {transform_indices = @transform_3, window_bounds = array<i64: 1, 12, 128, 32>}, {transform_indices = @transform_4, window_bounds = array<i64: 1, 12, 1, 32>}, {transform_indices = @transform_5, window_bounds = array<i64: 1, 4, 32, 128>}, {transform_indices = @transform_6, window_bounds = array<i64: 1, 1, 128>}, {transform_indices = @transform_7, window_bounds = array<i64: 1, 1, 128>}, {transform_indices = @transform_8, window_bounds = array<i64: 1, 1, 128>}, {transform_indices = @transform_9, window_bounds = array<i64: 1, 128, 256>}, {transform_indices = @transform_10, window_bounds = array<i64: 1, 1, 256>}, {transform_indices = @transform_11, window_bounds = array<i64: 1, 256, 128>}, {transform_indices = @transform_12, window_bounds = array<i64: 1, 1, 128>}, {transform_indices = @transform_13, window_bounds = array<i64: 1, 1, 128>}, {transform_indices = @transform_14, window_bounds = array<i64: 1, 1, 128>}, {transform_indices = @transform_15, window_bounds = array<i64: 8, 128>}]} {
    %c0_i32 = arith.constant 0 : i32
    %0 = arith.cmpi eq, %arg1, %c0_i32 : i32
    %1 = arith.extui %0 : i1 to i32
    %c0_i32_0 = arith.constant 0 : i32
    %2 = arith.cmpi ne, %1, %c0_i32_0 : i32
    scf.if %2 {
      %c0_66 = arith.constant 0 : index
      %c0_67 = arith.constant 0 : index
      %130 = vector.load %arg2[%c0_66, %c0_67] : memref<8x128xf32, #tpu.memory_space<vmem>>, vector<8x128xf32>
      %c0_68 = arith.constant 0 : index
      %c0_69 = arith.constant 0 : index
      %131 = vector.load %arg3[%c0_68, %c0_69] : memref<1x128xf32, #tpu.memory_space<vmem>>, vector<1x128xf32>
      %c0_70 = arith.constant 0 : index
      %c0_71 = arith.constant 0 : index
      %132 = vector.load %arg4[%c0_70, %c0_71] : memref<1x128xf32, #tpu.memory_space<vmem>>, vector<1x128xf32>
      %cst_72 = arith.constant dense<0.000000e+00> : vector<8xf32>
      %133 = vector.multi_reduction <add>, %130, %cst_72 [1] : vector<8x128xf32> to vector<8xf32>
      %134 = vector.shape_cast %133 : vector<8xf32> to vector<8x1xf32>
      %cst_73 = arith.constant 1.280000e+02 : f32
      %135 = vector.broadcast %cst_73 : f32 to vector<8x1xf32>
      %136 = arith.divf %134, %135 : vector<8x1xf32>
      %137 = vector.broadcast %136 : vector<8x1xf32> to vector<8x128xf32>
      %138 = arith.subf %130, %137 : vector<8x128xf32>
      %139 = arith.mulf %138, %138 : vector<8x128xf32>
      %cst_74 = arith.constant dense<0.000000e+00> : vector<8xf32>
      %140 = vector.multi_reduction <add>, %139, %cst_74 [1] : vector<8x128xf32> to vector<8xf32>
      %141 = vector.shape_cast %140 : vector<8xf32> to vector<8x1xf32>
      %cst_75 = arith.constant 1.280000e+02 : f32
      %142 = vector.broadcast %cst_75 : f32 to vector<8x1xf32>
      %143 = arith.divf %141, %142 : vector<8x1xf32>
      %144 = vector.broadcast %136 : vector<8x1xf32> to vector<8x128xf32>
      %145 = arith.subf %130, %144 : vector<8x128xf32>
      %cst_76 = arith.constant 9.99999996E-13 : f32
      %146 = vector.broadcast %cst_76 : f32 to vector<8x1xf32>
      %147 = arith.addf %143, %146 : vector<8x1xf32>
      %148 = math.rsqrt %147 : vector<8x1xf32>
      %149 = vector.broadcast %148 : vector<8x1xf32> to vector<8x128xf32>
      %150 = arith.mulf %145, %149 : vector<8x128xf32>
      %151 = vector.broadcast %131 : vector<1x128xf32> to vector<8x128xf32>
      %152 = arith.mulf %150, %151 : vector<8x128xf32>
      %153 = vector.broadcast %132 : vector<1x128xf32> to vector<8x128xf32>
      %154 = arith.addf %152, %153 : vector<8x128xf32>
      %c0_77 = arith.constant 0 : index
      %c0_78 = arith.constant 0 : index
      %155 = vector.load %arg18[%c0_77, %c0_78] : memref<8x128xf32, #tpu.memory_space<vmem>>, vector<8x128xf32>
      tpu.vector_store %arg18[%c0_77, %c0_78], %154 {strides = array<i32>} : memref<8x128xf32, #tpu.memory_space<vmem>>, vector<8x128xf32>,
    } else {
    }
    %c0 = arith.constant 0 : index
    %c0_1 = arith.constant 0 : index
    %3 = vector.load %arg18[%c0, %c0_1] : memref<8x128xf32, #tpu.memory_space<vmem>>, vector<8x128xf32>
    %4 = arith.truncf %3 : vector<8x128xf32> to vector<8x128xbf16>
    %5 = vector.shape_cast %4 : vector<8x128xbf16> to vector<1x8x128xbf16>
    %6 = vector.shape_cast %5 : vector<1x8x128xbf16> to vector<1x8x128xbf16>
    %7 = vector.broadcast %6 : vector<1x8x128xbf16> to vector<12x8x128xbf16>
    %c0_2 = arith.constant 0 : index
    %c0_3 = arith.constant 0 : index
    %c0_4 = arith.constant 0 : index
    %c0_5 = arith.constant 0 : index
    %8 = vector.load %arg5[%c0_2, %c0_3, %c0_4, %c0_5] : memref<1x12x128x32xbf16, #tpu.memory_space<vmem>>, vector<1x12x128x32xbf16>
    %9 = vector.shape_cast %8 : vector<1x12x128x32xbf16> to vector<12x128x32xbf16>
    "tpu.trace_start"() <{level = 10 : i32, message = "nsh,nhd->nsd"}> : () -> ()
    %cst = arith.constant dense<0.000000e+00> : vector<12x8x32xf32>
    %10 = tpu.matmul %7, %9, %cst {dimension_numbers = #tpu.dot_dimension_numbers<[2], [1], [1], [2], [0, 0, 0, 1, 1, 2], [0], [0]>} : vector<12x8x128xbf16>, vector<12x128x32xbf16>, vector<12x8x32xf32> -> vector<12x8x32xf32>
    "tpu.trace_stop"() : () -> ()
    %c0_6 = arith.constant 0 : index
    %c0_7 = arith.constant 0 : index
    %c0_8 = arith.constant 0 : index
    %c0_9 = arith.constant 0 : index
    %11 = vector.load %arg6[%c0_6, %c0_7, %c0_8, %c0_9] : memref<1x12x1x32xf32, #tpu.memory_space<vmem>>, vector<1x12x1x32xf32>
    %12 = vector.shape_cast %11 : vector<1x12x1x32xf32> to vector<12x1x32xf32>
    %13 = vector.broadcast %12 : vector<12x1x32xf32> to vector<12x8x32xf32>
    %14 = arith.addf %10, %13 : vector<12x8x32xf32>
    %15 = vector.extract_strided_slice %14 {offsets = [0, 0, 0], sizes = [4, 8, 32], strides = [1, 1, 1]} : vector<12x8x32xf32> to vector<4x8x32xf32>
    %16 = vector.extract_strided_slice %14 {offsets = [4, 0, 0], sizes = [4, 8, 32], strides = [1, 1, 1]} : vector<12x8x32xf32> to vector<4x8x32xf32>
    %17 = vector.extract_strided_slice %14 {offsets = [8, 0, 0], sizes = [4, 8, 32], strides = [1, 1, 1]} : vector<12x8x32xf32> to vector<4x8x32xf32>
    %18 = arith.truncf %15 : vector<4x8x32xf32> to vector<4x8x32xbf16>
    %19 = arith.truncf %16 : vector<4x8x32xf32> to vector<4x8x32xbf16>
    "tpu.trace_start"() <{level = 10 : i32, message = "hqd,hkd->hqk"}> : () -> ()
    %cst_10 = arith.constant dense<0.000000e+00> : vector<4x8x8xf32>
    %20 = tpu.matmul %18, %19, %cst_10 {dimension_numbers = #tpu.dot_dimension_numbers<[2], [2], [1], [1], [0, 0, 0, 1, 1, 1], [0], [0]>} : vector<4x8x32xbf16>, vector<4x8x32xbf16>, vector<4x8x8xf32> -> vector<4x8x8xf32>
    "tpu.trace_stop"() : () -> ()
    %cst_11 = arith.constant dense<0xFF800000> : vector<4x8xf32>
    %21 = vector.multi_reduction <maximumf>, %20, %cst_11 [2] : vector<4x8x8xf32> to vector<4x8xf32>
    %22 = vector.shape_cast %21 : vector<4x8xf32> to vector<4x8x1xf32>
    %23 = vector.broadcast %22 : vector<4x8x1xf32> to vector<4x8x8xf32>
    %24 = arith.subf %20, %23 : vector<4x8x8xf32>
    %25 = math.exp %24 : vector<4x8x8xf32>
    %cst_12 = arith.constant dense<0.000000e+00> : vector<4x8xf32>
    %26 = vector.multi_reduction <add>, %25, %cst_12 [2] : vector<4x8x8xf32> to vector<4x8xf32>
    %27 = vector.shape_cast %26 : vector<4x8xf32> to vector<4x8x1xf32>
    %28 = tpu.reciprocal %27 {approx = true} : vector<4x8x1xf32> -> vector<4x8x1xf32>
    %29 = vector.broadcast %28 : vector<4x8x1xf32> to vector<4x8x8xf32>
    %30 = arith.mulf %25, %29 : vector<4x8x8xf32>
    %31 = arith.truncf %30 : vector<4x8x8xf32> to vector<4x8x8xbf16>
    %32 = arith.truncf %17 : vector<4x8x32xf32> to vector<4x8x32xbf16>
    "tpu.trace_start"() <{level = 10 : i32, message = "hqk,hkd->hqd"}> : () -> ()
    %cst_13 = arith.constant dense<0.000000e+00> : vector<4x8x32xf32>
    %33 = tpu.matmul %31, %32, %cst_13 {dimension_numbers = #tpu.dot_dimension_numbers<[2], [1], [1], [2], [0, 0, 0, 1, 1, 2], [0], [0]>} : vector<4x8x8xbf16>, vector<4x8x32xbf16>, vector<4x8x32xf32> -> vector<4x8x32xf32>
    "tpu.trace_stop"() : () -> ()
    %34 = arith.truncf %33 : vector<4x8x32xf32> to vector<4x8x32xbf16>
    %c0_14 = arith.constant 0 : index
    %c0_15 = arith.constant 0 : index
    %c0_16 = arith.constant 0 : index
    %c0_17 = arith.constant 0 : index
    %35 = vector.load %arg7[%c0_14, %c0_15, %c0_16, %c0_17] : memref<1x4x32x128xbf16, #tpu.memory_space<vmem>>, vector<1x4x32x128xbf16>
    %36 = vector.shape_cast %35 : vector<1x4x32x128xbf16> to vector<4x32x128xbf16>
    "tpu.trace_start"() <{level = 10 : i32, message = "hqd,hdm->hqm"}> : () -> ()
    %cst_18 = arith.constant dense<0.000000e+00> : vector<4x8x128xf32>
    %37 = tpu.matmul %34, %36, %cst_18 {dimension_numbers = #tpu.dot_dimension_numbers<[2], [1], [1], [2], [0, 0, 0, 1, 1, 2], [0], [0]>} : vector<4x8x32xbf16>, vector<4x32x128xbf16>, vector<4x8x128xf32> -> vector<4x8x128xf32>
    "tpu.trace_stop"() : () -> ()
    %cst_19 = arith.constant dense<0.000000e+00> : vector<8x128xf32>
    %38 = vector.multi_reduction <add>, %37, %cst_19 [0] : vector<4x8x128xf32> to vector<8x128xf32>
    %c0_20 = arith.constant 0 : index
    %c0_21 = arith.constant 0 : index
    %c0_22 = arith.constant 0 : index
    %39 = vector.load %arg8[%c0_20, %c0_21, %c0_22] : memref<1x1x128xf32, #tpu.memory_space<vmem>>, vector<1x1x128xf32>
    %40 = vector.shape_cast %39 : vector<1x1x128xf32> to vector<1x128xf32>
    %41 = vector.broadcast %40 : vector<1x128xf32> to vector<8x128xf32>
    %42 = arith.addf %38, %41 : vector<8x128xf32>
    %43 = arith.addf %3, %42 : vector<8x128xf32>
    %c0_23 = arith.constant 0 : index
    %c0_24 = arith.constant 0 : index
    %c0_25 = arith.constant 0 : index
    %44 = vector.load %arg9[%c0_23, %c0_24, %c0_25] : memref<1x1x128xf32, #tpu.memory_space<vmem>>, vector<1x1x128xf32>
    %45 = vector.shape_cast %44 : vector<1x1x128xf32> to vector<1x128xf32>
    %c0_26 = arith.constant 0 : index
    %c0_27 = arith.constant 0 : index
    %c0_28 = arith.constant 0 : index
    %46 = vector.load %arg10[%c0_26, %c0_27, %c0_28] : memref<1x1x128xf32, #tpu.memory_space<vmem>>, vector<1x1x128xf32>
    %47 = vector.shape_cast %46 : vector<1x1x128xf32> to vector<1x128xf32>
    %cst_29 = arith.constant dense<0.000000e+00> : vector<8xf32>
    %48 = vector.multi_reduction <add>, %43, %cst_29 [1] : vector<8x128xf32> to vector<8xf32>
    %49 = vector.shape_cast %48 : vector<8xf32> to vector<8x1xf32>
    %cst_30 = arith.constant 1.280000e+02 : f32
    %50 = vector.broadcast %cst_30 : f32 to vector<8x1xf32>
    %51 = arith.divf %49, %50 : vector<8x1xf32>
    %52 = vector.broadcast %51 : vector<8x1xf32> to vector<8x128xf32>
    %53 = arith.subf %43, %52 : vector<8x128xf32>
    %54 = arith.mulf %53, %53 : vector<8x128xf32>
    %cst_31 = arith.constant dense<0.000000e+00> : vector<8xf32>
    %55 = vector.multi_reduction <add>, %54, %cst_31 [1] : vector<8x128xf32> to vector<8xf32>
    %56 = vector.shape_cast %55 : vector<8xf32> to vector<8x1xf32>
    %cst_32 = arith.constant 1.280000e+02 : f32
    %57 = vector.broadcast %cst_32 : f32 to vector<8x1xf32>
    %58 = arith.divf %56, %57 : vector<8x1xf32>
    %59 = vector.broadcast %51 : vector<8x1xf32> to vector<8x128xf32>
    %60 = arith.subf %43, %59 : vector<8x128xf32>
    %cst_33 = arith.constant 9.99999996E-13 : f32
    %61 = vector.broadcast %cst_33 : f32 to vector<8x1xf32>
    %62 = arith.addf %58, %61 : vector<8x1xf32>
    %63 = math.rsqrt %62 : vector<8x1xf32>
    %64 = vector.broadcast %63 : vector<8x1xf32> to vector<8x128xf32>
    %65 = arith.mulf %60, %64 : vector<8x128xf32>
    %66 = vector.broadcast %45 : vector<1x128xf32> to vector<8x128xf32>
    %67 = arith.mulf %65, %66 : vector<8x128xf32>
    %68 = vector.broadcast %47 : vector<1x128xf32> to vector<8x128xf32>
    %69 = arith.addf %67, %68 : vector<8x128xf32>
    %70 = arith.truncf %69 : vector<8x128xf32> to vector<8x128xbf16>
    %c0_34 = arith.constant 0 : index
    %c0_35 = arith.constant 0 : index
    %c0_36 = arith.constant 0 : index
    %71 = vector.load %arg11[%c0_34, %c0_35, %c0_36] : memref<1x128x256xbf16, #tpu.memory_space<vmem>>, vector<1x128x256xbf16>
    %72 = vector.shape_cast %71 : vector<1x128x256xbf16> to vector<128x256xbf16>
    %cst_37 = arith.constant dense<0.000000e+00> : vector<8x256xf32>
    %73 = tpu.matmul %70, %72, %cst_37 {dimension_numbers = #tpu.dot_dimension_numbers<[1], [0], [0], [1], [0, 0, 1, 1], [], []>} : vector<8x128xbf16>, vector<128x256xbf16>, vector<8x256xf32> -> vector<8x256xf32>
    %c0_38 = arith.constant 0 : index
    %c0_39 = arith.constant 0 : index
    %c0_40 = arith.constant 0 : index
    %74 = vector.load %arg12[%c0_38, %c0_39, %c0_40] : memref<1x1x256xf32, #tpu.memory_space<vmem>>, vector<1x1x256xf32>
    %75 = vector.shape_cast %74 : vector<1x1x256xf32> to vector<1x256xf32>
    %76 = vector.broadcast %75 : vector<1x256xf32> to vector<8x256xf32>
    %77 = arith.addf %73, %76 : vector<8x256xf32>
    %cst_41 = arith.constant 5.000000e-01 : f32
    %78 = vector.broadcast %cst_41 : f32 to vector<8x256xf32>
    %79 = arith.mulf %78, %77 : vector<8x256xf32>
    %cst_42 = arith.constant 4.471500e-02 : f32
    %80 = vector.broadcast %cst_42 : f32 to vector<8x256xf32>
    %81 = arith.mulf %80, %77 : vector<8x256xf32>
    %82 = arith.mulf %81, %77 : vector<8x256xf32>
    %83 = arith.mulf %82, %77 : vector<8x256xf32>
    %84 = arith.addf %77, %83 : vector<8x256xf32>
    %cst_43 = arith.constant 0.797884583 : f32
    %85 = vector.broadcast %cst_43 : f32 to vector<8x256xf32>
    %86 = arith.mulf %85, %84 : vector<8x256xf32>
    %87 = math.tanh %86 : vector<8x256xf32>
    %cst_44 = arith.constant 1.000000e+00 : f32
    %88 = vector.broadcast %cst_44 : f32 to vector<8x256xf32>
    %89 = arith.addf %88, %87 : vector<8x256xf32>
    %90 = arith.mulf %79, %89 : vector<8x256xf32>
    %91 = arith.truncf %90 : vector<8x256xf32> to vector<8x256xbf16>
    %c0_45 = arith.constant 0 : index
    %c0_46 = arith.constant 0 : index
    %c0_47 = arith.constant 0 : index
    %92 = vector.load %arg13[%c0_45, %c0_46, %c0_47] : memref<1x256x128xbf16, #tpu.memory_space<vmem>>, vector<1x256x128xbf16>
    %93 = vector.shape_cast %92 : vector<1x256x128xbf16> to vector<256x128xbf16>
    %cst_48 = arith.constant dense<0.000000e+00> : vector<8x128xf32>
    %94 = tpu.matmul %91, %93, %cst_48 {dimension_numbers = #tpu.dot_dimension_numbers<[1], [0], [0], [1], [0, 0, 1, 1], [], []>} : vector<8x256xbf16>, vector<256x128xbf16>, vector<8x128xf32> -> vector<8x128xf32>
    %c0_49 = arith.constant 0 : index
    %c0_50 = arith.constant 0 : index
    %c0_51 = arith.constant 0 : index
    %95 = vector.load %arg14[%c0_49, %c0_50, %c0_51] : memref<1x1x128xf32, #tpu.memory_space<vmem>>, vector<1x1x128xf32>
    %96 = vector.shape_cast %95 : vector<1x1x128xf32> to vector<1x128xf32>
    %97 = vector.broadcast %96 : vector<1x128xf32> to vector<8x128xf32>
    %98 = arith.addf %94, %97 : vector<8x128xf32>
    %99 = arith.addf %69, %98 : vector<8x128xf32>
    %c0_52 = arith.constant 0 : index
    %c0_53 = arith.constant 0 : index
    %c0_54 = arith.constant 0 : index
    %100 = vector.load %arg15[%c0_52, %c0_53, %c0_54] : memref<1x1x128xf32, #tpu.memory_space<vmem>>, vector<1x1x128xf32>
    %101 = vector.shape_cast %100 : vector<1x1x128xf32> to vector<1x128xf32>
    %c0_55 = arith.constant 0 : index
    %c0_56 = arith.constant 0 : index
    %c0_57 = arith.constant 0 : index
    %102 = vector.load %arg16[%c0_55, %c0_56, %c0_57] : memref<1x1x128xf32, #tpu.memory_space<vmem>>, vector<1x1x128xf32>
    %103 = vector.shape_cast %102 : vector<1x1x128xf32> to vector<1x128xf32>
    %cst_58 = arith.constant dense<0.000000e+00> : vector<8xf32>
    %104 = vector.multi_reduction <add>, %99, %cst_58 [1] : vector<8x128xf32> to vector<8xf32>
    %105 = vector.shape_cast %104 : vector<8xf32> to vector<8x1xf32>
    %cst_59 = arith.constant 1.280000e+02 : f32
    %106 = vector.broadcast %cst_59 : f32 to vector<8x1xf32>
    %107 = arith.divf %105, %106 : vector<8x1xf32>
    %108 = vector.broadcast %107 : vector<8x1xf32> to vector<8x128xf32>
    %109 = arith.subf %99, %108 : vector<8x128xf32>
    %110 = arith.mulf %109, %109 : vector<8x128xf32>
    %cst_60 = arith.constant dense<0.000000e+00> : vector<8xf32>
    %111 = vector.multi_reduction <add>, %110, %cst_60 [1] : vector<8x128xf32> to vector<8xf32>
    %112 = vector.shape_cast %111 : vector<8xf32> to vector<8x1xf32>
    %cst_61 = arith.constant 1.280000e+02 : f32
    %113 = vector.broadcast %cst_61 : f32 to vector<8x1xf32>
    %114 = arith.divf %112, %113 : vector<8x1xf32>
    %115 = vector.broadcast %107 : vector<8x1xf32> to vector<8x128xf32>
    %116 = arith.subf %99, %115 : vector<8x128xf32>
    %cst_62 = arith.constant 9.99999996E-13 : f32
    %117 = vector.broadcast %cst_62 : f32 to vector<8x1xf32>
    %118 = arith.addf %114, %117 : vector<8x1xf32>
    %119 = math.rsqrt %118 : vector<8x1xf32>
    %120 = vector.broadcast %119 : vector<8x1xf32> to vector<8x128xf32>
    %121 = arith.mulf %116, %120 : vector<8x128xf32>
    %122 = vector.broadcast %101 : vector<1x128xf32> to vector<8x128xf32>
    %123 = arith.mulf %121, %122 : vector<8x128xf32>
    %124 = vector.broadcast %103 : vector<1x128xf32> to vector<8x128xf32>
    %125 = arith.addf %123, %124 : vector<8x128xf32>
    %c0_63 = arith.constant 0 : index
    %c0_64 = arith.constant 0 : index
    %126 = vector.load %arg18[%c0_63, %c0_64] : memref<8x128xf32, #tpu.memory_space<vmem>>, vector<8x128xf32>
    tpu.vector_store %arg18[%c0_63, %c0_64], %125 {strides = array<i32>} : memref<8x128xf32, #tpu.memory_space<vmem>>, vector<8x128xf32>,
    %c1_i32 = arith.constant 1 : i32
    %127 = arith.cmpi eq, %arg1, %c1_i32 : i32
    %128 = arith.extui %127 : i1 to i32
    %c0_i32_65 = arith.constant 0 : i32
    %129 = arith.cmpi ne, %128, %c0_i32_65 : i32
    scf.if %129 {
      %c0_66 = arith.constant 0 : index
      %c0_67 = arith.constant 0 : index
      %130 = vector.load %arg17[%c0_66, %c0_67] : memref<8x128xf32, #tpu.memory_space<vmem>>, vector<8x128xf32>
      tpu.vector_store %arg17[%c0_66, %c0_67], %125 {strides = array<i32>} : memref<8x128xf32, #tpu.memory_space<vmem>>, vector<8x128xf32>,
    } else {
    }
    return
  }
  func.func @transform_0(%arg0: i32, %arg1: i32) -> (i32, i32) {
    %c0_i32 = arith.constant 0 : i32
    %c0_i32_0 = arith.constant 0 : i32
    return %arg0, %c0_i32 : i32, i32
  }
  func.func @transform_1(%arg0: i32, %arg1: i32) -> (i32, i32) {
    %c0_i32 = arith.constant 0 : i32
    %c0_i32_0 = arith.constant 0 : i32
    %c0_i32_1 = arith.constant 0 : i32
    return %c0_i32, %c0_i32_0 : i32, i32
  }
  func.func @transform_2(%arg0: i32, %arg1: i32) -> (i32, i32) {
    %c0_i32 = arith.constant 0 : i32
    %c0_i32_0 = arith.constant 0 : i32
    %c0_i32_1 = arith.constant 0 : i32
    return %c0_i32, %c0_i32_0 : i32, i32
  }
  func.func @transform_3(%arg0: i32, %arg1: i32) -> (i32, i32, i32, i32) {
    %c0_i32 = arith.constant 0 : i32
    %c0_i32_0 = arith.constant 0 : i32
    %c0_i32_1 = arith.constant 0 : i32
    %c0_i32_2 = arith.constant 0 : i32
    return %arg1, %c0_i32, %c0_i32_0, %c0_i32_1 : i32, i32, i32, i32
  }
  func.func @transform_4(%arg0: i32, %arg1: i32) -> (i32, i32, i32, i32) {
    %c0_i32 = arith.constant 0 : i32
    %c0_i32_0 = arith.constant 0 : i32
    %c0_i32_1 = arith.constant 0 : i32
    %c0_i32_2 = arith.constant 0 : i32
    return %arg1, %c0_i32, %c0_i32_0, %c0_i32_1 : i32, i32, i32, i32
  }
  func.func @transform_5(%arg0: i32, %arg1: i32) -> (i32, i32, i32, i32) {
    %c0_i32 = arith.constant 0 : i32
    %c0_i32_0 = arith.constant 0 : i32
    %c0_i32_1 = arith.constant 0 : i32
    %c0_i32_2 = arith.constant 0 : i32
    return %arg1, %c0_i32, %c0_i32_0, %c0_i32_1 : i32, i32, i32, i32
  }
  func.func @transform_6(%arg0: i32, %arg1: i32) -> (i32, i32, i32) {
    %c0_i32 = arith.constant 0 : i32
    %c0_i32_0 = arith.constant 0 : i32
    %c0_i32_1 = arith.constant 0 : i32
    return %arg1, %c0_i32, %c0_i32_0 : i32, i32, i32
  }
  func.func @transform_7(%arg0: i32, %arg1: i32) -> (i32, i32, i32) {
    %c0_i32 = arith.constant 0 : i32
    %c0_i32_0 = arith.constant 0 : i32
    %c0_i32_1 = arith.constant 0 : i32
    return %arg1, %c0_i32, %c0_i32_0 : i32, i32, i32
  }
  func.func @transform_8(%arg0: i32, %arg1: i32) -> (i32, i32, i32) {
    %c0_i32 = arith.constant 0 : i32
    %c0_i32_0 = arith.constant 0 : i32
    %c0_i32_1 = arith.constant 0 : i32
    return %arg1, %c0_i32, %c0_i32_0 : i32, i32, i32
  }
  func.func @transform_9(%arg0: i32, %arg1: i32) -> (i32, i32, i32) {
    %c0_i32 = arith.constant 0 : i32
    %c0_i32_0 = arith.constant 0 : i32
    %c0_i32_1 = arith.constant 0 : i32
    return %arg1, %c0_i32, %c0_i32_0 : i32, i32, i32
  }
  func.func @transform_10(%arg0: i32, %arg1: i32) -> (i32, i32, i32) {
    %c0_i32 = arith.constant 0 : i32
    %c0_i32_0 = arith.constant 0 : i32
    %c0_i32_1 = arith.constant 0 : i32
    return %arg1, %c0_i32, %c0_i32_0 : i32, i32, i32
  }
  func.func @transform_11(%arg0: i32, %arg1: i32) -> (i32, i32, i32) {
    %c0_i32 = arith.constant 0 : i32
    %c0_i32_0 = arith.constant 0 : i32
    %c0_i32_1 = arith.constant 0 : i32
    return %arg1, %c0_i32, %c0_i32_0 : i32, i32, i32
  }
  func.func @transform_12(%arg0: i32, %arg1: i32) -> (i32, i32, i32) {
    %c0_i32 = arith.constant 0 : i32
    %c0_i32_0 = arith.constant 0 : i32
    %c0_i32_1 = arith.constant 0 : i32
    return %arg1, %c0_i32, %c0_i32_0 : i32, i32, i32
  }
  func.func @transform_13(%arg0: i32, %arg1: i32) -> (i32, i32, i32) {
    %c0_i32 = arith.constant 0 : i32
    %c0_i32_0 = arith.constant 0 : i32
    %c0_i32_1 = arith.constant 0 : i32
    return %arg1, %c0_i32, %c0_i32_0 : i32, i32, i32
  }
  func.func @transform_14(%arg0: i32, %arg1: i32) -> (i32, i32, i32) {
    %c0_i32 = arith.constant 0 : i32
    %c0_i32_0 = arith.constant 0 : i32
    %c0_i32_1 = arith.constant 0 : i32
    return %arg1, %c0_i32, %c0_i32_0 : i32, i32, i32
  }
  func.func @transform_15(%arg0: i32, %arg1: i32) -> (i32, i32) {
    %c0_i32 = arith.constant 0 : i32
    %c0_i32_0 = arith.constant 0 : i32
    return %arg0, %c0_i32 : i32, i32
  }
}

</mosaic_0001>

<llo_original>
// kernel: tpu_custom_call.1
$region0: #{tpu_custom_call.1}
  #allocation0 [shape = 'u32[]', space=smem, size = 0x4, offset = 0x4, fixed_abs, tag = 'smem constant byte address 0x4 - core index']
  #allocation1 [shape = 'u32[72,128]{1,0:T(1,128)}', space=vmem, size = 0x9000, scoped, tag = 'internal scratch']
  #allocation2 [shape = 'f32[8,128]{1,0:T(8,128)}', space=vmem, size = 0x1000, scoped, tag = 'scratch operand']
  %s0 = inlined_call_operand.vmem [shape: f32[16,128], index: 0, kind: input, shape index: {}]
  %s1 = inlined_call_operand.vmem [shape: f32[1,128], index: 1, kind: input, shape index: {}]
  %s2 = inlined_call_operand.vmem [shape: f32[1,128], index: 2, kind: input, shape index: {}]
  %s3 = inlined_call_operand.vmem [shape: bf16[2,12,128,32], index: 3, kind: input, shape index: {}]
  %s4 = inlined_call_operand.vmem [shape: f32[2,12,1,32], index: 4, kind: input, shape index: {}]
  %s5 = inlined_call_operand.vmem [shape: bf16[2,4,32,128], index: 5, kind: input, shape index: {}]
  %s6 = inlined_call_operand.vmem [shape: f32[2,1,128], index: 6, kind: input, shape index: {}]
  %s7 = inlined_call_operand.vmem [shape: f32[2,1,128], index: 7, kind: input, shape index: {}]
  %s8 = inlined_call_operand.vmem [shape: f32[2,1,128], index: 8, kind: input, shape index: {}]
  %s9 = inlined_call_operand.vmem [shape: bf16[2,128,256], index: 9, kind: input, shape index: {}]
  %s10 = inlined_call_operand.vmem [shape: f32[2,1,256], index: 10, kind: input, shape index: {}]
  %s11 = inlined_call_operand.vmem [shape: bf16[2,256,128], index: 11, kind: input, shape index: {}]
  %s12 = inlined_call_operand.vmem [shape: f32[2,1,128], index: 12, kind: input, shape index: {}]
  %s13 = inlined_call_operand.vmem [shape: f32[2,1,128], index: 13, kind: input, shape index: {}]
  %s14 = inlined_call_operand.vmem [shape: f32[2,1,128], index: 14, kind: input, shape index: {}]
  %s15 = inlined_call_operand.hbm [shape: f32[16,128], index: 15, kind: output, shape index: {}]
  %s16 = sld [smem:[#allocation0]]
  $region101: #{tpu_custom_call.1} parent=0
    _
  %s18 = ssub.s32 1, %s16
  %s19 = scalar_select 0, %s18, %s16
  $region1: #{tpu_custom_call.1} parent=0
    #allocation3 [shape = 'u8[8192]{0}', space=vmem, size = 0x2000, scoped, tag = 'output window, operand 0']
    #allocation4 [shape = 's32[2]{0}', space=sflag, size = 0x8, scoped, tag = 'scoped memory for tpu_custom_call.1']
    %20 = vsyncpa [#allocation4], 0
    %s21 = scalar_lea.sflag [#allocation4], 1
    %22 = vsyncpa %s21, 0
    loop: start=0, step=1, limit=6
    $region2: #{tpu_custom_call.1} parent=1 // loop_pre_header
      _
    $region3: #{tpu_custom_call.1} parent=1 // loop_header
      %s24 = sphi 0, %s28
      %p25 = scmp.ge.s32.totalorder %s24, 6
      %s31 = sphi 0, %s43
      %s32 = sphi 0, %s39
      %s33 = sphi 0, %s31
      %s34 = sphi 0, %s32
      %s35 = sphi 0, %s33
      %s36 = sphi 0, %s34
      %s46 = sphi 0, %s48
      %s49 = sphi 0, %s46
      %s50 = sphi 0, %s49
      %s66 = sphi 0, %s50
      %s70 = sphi 0, %s70
      %s72 = sphi 0, %s70
      %s73 = sphi 0, %s72
      %s87 = sphi 0, %s73
      %s91 = sphi 0, %s91
      %s93 = sphi 0, %s91
      %s94 = sphi 0, %s93
      %s108 = sphi 0, %s94
      %s114 = sphi 0, %s116
      %s117 = sphi 0, %s114
      %s118 = sphi 0, %s117
      %s134 = sphi 0, %s118
      %s140 = sphi 0, %s142
      %s143 = sphi 0, %s140
      %s144 = sphi 0, %s143
      %s160 = sphi 0, %s144
      %s166 = sphi 0, %s168
      %s169 = sphi 0, %s166
      %s170 = sphi 0, %s169
      %s186 = sphi 0, %s170
      %s192 = sphi 0, %s194
      %s195 = sphi 0, %s192
      %s196 = sphi 0, %s195
      %s212 = sphi 0, %s196
      %s218 = sphi 0, %s220
      %s221 = sphi 0, %s218
      %s222 = sphi 0, %s221
      %s238 = sphi 0, %s222
      %s244 = sphi 0, %s246
      %s247 = sphi 0, %s244
      %s248 = sphi 0, %s247
      %s264 = sphi 0, %s248
      %s270 = sphi 0, %s272
      %s273 = sphi 0, %s270
      %s274 = sphi 0, %s273
      %s290 = sphi 0, %s274
      %s296 = sphi 0, %s298
      %s299 = sphi 0, %s296
      %s300 = sphi 0, %s299
      %s316 = sphi 0, %s300
      %s322 = sphi 0, %s324
      %s325 = sphi 0, %s322
      %s326 = sphi 0, %s325
      %s342 = sphi 0, %s326
      %s348 = sphi 0, %s350
      %s351 = sphi 0, %s348
      %s352 = sphi 0, %s351
      %s368 = sphi 0, %s352
      %s374 = sphi 0, %s376
      %s377 = sphi 0, %s374
      %s378 = sphi 0, %s377
      %s394 = sphi 0, %s378
      %s400 = sphi 0, %s402
      %s403 = sphi 0, %s400
      %s404 = sphi 0, %s403
      %s420 = sphi 0, %s404
      %s426 = sphi 0, %s428
      %s429 = sphi 0, %s426
      %s430 = sphi 0, %s429
      %s446 = sphi 0, %s430
    $region4: #{tpu_custom_call.1} parent=1 // loop_header_branch
      %27 = sbr.rel (%p25) target = $region8
    $region5: #{tpu_custom_call.1} parent=1 // loop_body
      %s29 = ssub.s32 %s24, 1
      %s30 = ssub.s32 %s24, 2
      %s37 = sadd.s32 1, %s32
      %p38 = scmp.ge.s32.totalorder %s37, 2
      %s39 = scalar_select %p38, 0, %s37
      %s40 = sadd.s32 1, %s31
      %s41 = scalar_select %p38, %s40, %s31
      %p42 = scmp.ge.s32.totalorder %s41, 2
      %s43 = scalar_select %p42, 0, %s41
      %s44 = ssub.s32 %s31, %s43
      %p45 = scmp.eq.s32.totalorder %s44, 0
      %s47 = sadd.s32 %s46, 1
      %s48 = scalar_select %p45, %s46, %s47
      %p51 = pneg %p45
      %p52 = scmp.eq.s32.totalorder %s24, 3
      %p53 = por %p51, %p52
      %p54 = scmp.ne.s32.totalorder %s46, %s49
      %p55 = scmp.eq.s32.totalorder %s24, 0
      %p56 = por %p54, %p55
      %p57 = scmp.ne.s32.totalorder %s46, %s49
      %p58 = scmp.eq.s32.totalorder %s29, 3
      %p59 = por %p57, %p58
      %p60 = scmp.ne.s32.totalorder %s49, %s50
      %p61 = scmp.eq.s32.totalorder %s29, 0
      %p62 = por %p60, %p61
      %p63 = scmp.ne.s32.totalorder %s49, %s50
      %p64 = scmp.eq.s32.totalorder %s30, 3
      %p65 = por %p63, %p64
      %p67 = scmp.ne.s32.totalorder %s50, %s66
      %p68 = scmp.eq.s32.totalorder %s30, 0
      %p69 = por %p67, %p68
      %s71 = sadd.s32 %s70, 1
      %p74 = scmp.eq.s32.totalorder %s24, 3
      %p75 = scmp.ne.s32.totalorder %s70, %s72
      %p76 = scmp.eq.s32.totalorder %s24, 0
      %p77 = por %p75, %p76
      %p78 = scmp.ne.s32.totalorder %s70, %s72
      %p79 = scmp.eq.s32.totalorder %s29, 3
      %p80 = por %p78, %p79
      %p81 = scmp.ne.s32.totalorder %s72, %s73
      %p82 = scmp.eq.s32.totalorder %s29, 0
      %p83 = por %p81, %p82
      %p84 = scmp.ne.s32.totalorder %s72, %s73
      %p85 = scmp.eq.s32.totalorder %s30, 3
      %p86 = por %p84, %p85
      %p88 = scmp.ne.s32.totalorder %s73, %s87
      %p89 = scmp.eq.s32.totalorder %s30, 0
      %p90 = por %p88, %p89
      %s92 = sadd.s32 %s91, 1
      %p95 = scmp.eq.s32.totalorder %s24, 3
      %p96 = scmp.ne.s32.totalorder %s91, %s93
      %p97 = scmp.eq.s32.totalorder %s24, 0
      %p98 = por %p96, %p97
      %p99 = scmp.ne.s32.totalorder %s91, %s93
      %p100 = scmp.eq.s32.totalorder %s29, 3
      %p101 = por %p99, %p100
      %p102 = scmp.ne.s32.totalorder %s93, %s94
      %p103 = scmp.eq.s32.totalorder %s29, 0
      %p104 = por %p102, %p103
      %p105 = scmp.ne.s32.totalorder %s93, %s94
      %p106 = scmp.eq.s32.totalorder %s30, 3
      %p107 = por %p105, %p106
      %p109 = scmp.ne.s32.totalorder %s94, %s108
      %p110 = scmp.eq.s32.totalorder %s30, 0
      %p111 = por %p109, %p110
      %s112 = ssub.s32 %s32, %s39
      %p113 = scmp.eq.s32.totalorder %s112, 0
      %s115 = sadd.s32 %s114, 1
      %s116 = scalar_select %p113, %s114, %s115
      %p119 = pneg %p113
      %p120 = scmp.eq.s32.totalorder %s24, 3
      %p121 = por %p119, %p120
      %p122 = scmp.ne.s32.totalorder %s114, %s117
      %p123 = scmp.eq.s32.totalorder %s24, 0
      %p124 = por %p122, %p123
      %p125 = scmp.ne.s32.totalorder %s114, %s117
      %p126 = scmp.eq.s32.totalorder %s29, 3
      %p127 = por %p125, %p126
      %p128 = scmp.ne.s32.totalorder %s117, %s118
      %p129 = scmp.eq.s32.totalorder %s29, 0
      %p130 = por %p128, %p129
      %p131 = scmp.ne.s32.totalorder %s117, %s118
      %p132 = scmp.eq.s32.totalorder %s30, 3
      %p133 = por %p131, %p132
      %p135 = scmp.ne.s32.totalorder %s118, %s134
      %p136 = scmp.eq.s32.totalorder %s30, 0
      %p137 = por %p135, %p136
      %s138 = ssub.s32 %s32, %s39
      %p139 = scmp.eq.s32.totalorder %s138, 0
      %s141 = sadd.s32 %s140, 1
      %s142 = scalar_select %p139, %s140, %s141
      %p145 = pneg %p139
      %p146 = scmp.eq.s32.totalorder %s24, 3
      %p147 = por %p145, %p146
      %p148 = scmp.ne.s32.totalorder %s140, %s143
      %p149 = scmp.eq.s32.totalorder %s24, 0
      %p150 = por %p148, %p149
      %p151 = scmp.ne.s32.totalorder %s140, %s143
      %p152 = scmp.eq.s32.totalorder %s29, 3
      %p153 = por %p151, %p152
      %p154 = scmp.ne.s32.totalorder %s143, %s144
      %p155 = scmp.eq.s32.totalorder %s29, 0
      %p156 = por %p154, %p155
      %p157 = scmp.ne.s32.totalorder %s143, %s144
      %p158 = scmp.eq.s32.totalorder %s30, 3
      %p159 = por %p157, %p158
      %p161 = scmp.ne.s32.totalorder %s144, %s160
      %p162 = scmp.eq.s32.totalorder %s30, 0
      %p163 = por %p161, %p162
      %s164 = ssub.s32 %s32, %s39
      %p165 = scmp.eq.s32.totalorder %s164, 0
      %s167 = sadd.s32 %s166, 1
      %s168 = scalar_select %p165, %s166, %s167
      %p171 = pneg %p165
      %p172 = scmp.eq.s32.totalorder %s24, 3
      %p173 = por %p171, %p172
      %p174 = scmp.ne.s32.totalorder %s166, %s169
      %p175 = scmp.eq.s32.totalorder %s24, 0
      %p176 = por %p174, %p175
      %p177 = scmp.ne.s32.totalorder %s166, %s169
      %p178 = scmp.eq.s32.totalorder %s29, 3
      %p179 = por %p177, %p178
      %p180 = scmp.ne.s32.totalorder %s169, %s170
      %p181 = scmp.eq.s32.totalorder %s29, 0
      %p182 = por %p180, %p181
      %p183 = scmp.ne.s32.totalorder %s169, %s170
      %p184 = scmp.eq.s32.totalorder %s30, 3
      %p185 = por %p183, %p184
      %p187 = scmp.ne.s32.totalorder %s170, %s186
      %p188 = scmp.eq.s32.totalorder %s30, 0
      %p189 = por %p187, %p188
      %s190 = ssub.s32 %s32, %s39
      %p191 = scmp.eq.s32.totalorder %s190, 0
      %s193 = sadd.s32 %s192, 1
      %s194 = scalar_select %p191, %s192, %s193
      %p197 = pneg %p191
      %p198 = scmp.eq.s32.totalorder %s24, 3
      %p199 = por %p197, %p198
      %p200 = scmp.ne.s32.totalorder %s192, %s195
      %p201 = scmp.eq.s32.totalorder %s24, 0
      %p202 = por %p200, %p201
      %p203 = scmp.ne.s32.totalorder %s192, %s195
      %p204 = scmp.eq.s32.totalorder %s29, 3
      %p205 = por %p203, %p204
      %p206 = scmp.ne.s32.totalorder %s195, %s196
      %p207 = scmp.eq.s32.totalorder %s29, 0
      %p208 = por %p206, %p207
      %p209 = scmp.ne.s32.totalorder %s195, %s196
      %p210 = scmp.eq.s32.totalorder %s30, 3
      %p211 = por %p209, %p210
      %p213 = scmp.ne.s32.totalorder %s196, %s212
      %p214 = scmp.eq.s32.totalorder %s30, 0
      %p215 = por %p213, %p214
      %s216 = ssub.s32 %s32, %s39
      %p217 = scmp.eq.s32.totalorder %s216, 0
      %s219 = sadd.s32 %s218, 1
      %s220 = scalar_select %p217, %s218, %s219
      %p223 = pneg %p217
      %p224 = scmp.eq.s32.totalorder %s24, 3
      %p225 = por %p223, %p224
      %p226 = scmp.ne.s32.totalorder %s218, %s221
      %p227 = scmp.eq.s32.totalorder %s24, 0
      %p228 = por %p226, %p227
      %p229 = scmp.ne.s32.totalorder %s218, %s221
      %p230 = scmp.eq.s32.totalorder %s29, 3
      %p231 = por %p229, %p230
      %p232 = scmp.ne.s32.totalorder %s221, %s222
      %p233 = scmp.eq.s32.totalorder %s29, 0
      %p234 = por %p232, %p233
      %p235 = scmp.ne.s32.totalorder %s221, %s222
      %p236 = scmp.eq.s32.totalorder %s30, 3
      %p237 = por %p235, %p236
      %p239 = scmp.ne.s32.totalorder %s222, %s238
      %p240 = scmp.eq.s32.totalorder %s30, 0
      %p241 = por %p239, %p240
      %s242 = ssub.s32 %s32, %s39
      %p243 = scmp.eq.s32.totalorder %s242, 0
      %s245 = sadd.s32 %s244, 1
      %s246 = scalar_select %p243, %s244, %s245
      %p249 = pneg %p243
      %p250 = scmp.eq.s32.totalorder %s24, 3
      %p251 = por %p249, %p250
      %p252 = scmp.ne.s32.totalorder %s244, %s247
      %p253 = scmp.eq.s32.totalorder %s24, 0
      %p254 = por %p252, %p253
      %p255 = scmp.ne.s32.totalorder %s244, %s247
      %p256 = scmp.eq.s32.totalorder %s29, 3
      %p257 = por %p255, %p256
      %p258 = scmp.ne.s32.totalorder %s247, %s248
      %p259 = scmp.eq.s32.totalorder %s29, 0
      %p260 = por %p258, %p259
      %p261 = scmp.ne.s32.totalorder %s247, %s248
      %p262 = scmp.eq.s32.totalorder %s30, 3
      %p263 = por %p261, %p262
      %p265 = scmp.ne.s32.totalorder %s248, %s264
      %p266 = scmp.eq.s32.totalorder %s30, 0
      %p267 = por %p265, %p266
      %s268 = ssub.s32 %s32, %s39
      %p269 = scmp.eq.s32.totalorder %s268, 0
      %s271 = sadd.s32 %s270, 1
      %s272 = scalar_select %p269, %s270, %s271
      %p275 = pneg %p269
      %p276 = scmp.eq.s32.totalorder %s24, 3
      %p277 = por %p275, %p276
      %p278 = scmp.ne.s32.totalorder %s270, %s273
      %p279 = scmp.eq.s32.totalorder %s24, 0
      %p280 = por %p278, %p279
      %p281 = scmp.ne.s32.totalorder %s270, %s273
      %p282 = scmp.eq.s32.totalorder %s29, 3
      %p283 = por %p281, %p282
      %p284 = scmp.ne.s32.totalorder %s273, %s274
      %p285 = scmp.eq.s32.totalorder %s29, 0
      %p286 = por %p284, %p285
      %p287 = scmp.ne.s32.totalorder %s273, %s274
      %p288 = scmp.eq.s32.totalorder %s30, 3
      %p289 = por %p287, %p288
      %p291 = scmp.ne.s32.totalorder %s274, %s290
      %p292 = scmp.eq.s32.totalorder %s30, 0
      %p293 = por %p291, %p292
      %s294 = ssub.s32 %s32, %s39
      %p295 = scmp.eq.s32.totalorder %s294, 0
      %s297 = sadd.s32 %s296, 1
      %s298 = scalar_select %p295, %s296, %s297
      %p301 = pneg %p295
      %p302 = scmp.eq.s32.totalorder %s24, 3
      %p303 = por %p301, %p302
      %p304 = scmp.ne.s32.totalorder %s296, %s299
      %p305 = scmp.eq.s32.totalorder %s24, 0
      %p306 = por %p304, %p305
      %p307 = scmp.ne.s32.totalorder %s296, %s299
      %p308 = scmp.eq.s32.totalorder %s29, 3
      %p309 = por %p307, %p308
      %p310 = scmp.ne.s32.totalorder %s299, %s300
      %p311 = scmp.eq.s32.totalorder %s29, 0
      %p312 = por %p310, %p311
      %p313 = scmp.ne.s32.totalorder %s299, %s300
      %p314 = scmp.eq.s32.totalorder %s30, 3
      %p315 = por %p313, %p314
      %p317 = scmp.ne.s32.totalorder %s300, %s316
      %p318 = scmp.eq.s32.totalorder %s30, 0
      %p319 = por %p317, %p318
      %s320 = ssub.s32 %s32, %s39
      %p321 = scmp.eq.s32.totalorder %s320, 0
      %s323 = sadd.s32 %s322, 1
      %s324 = scalar_select %p321, %s322, %s323
      %p327 = pneg %p321
      %p328 = scmp.eq.s32.totalorder %s24, 3
      %p329 = por %p327, %p328
      %p330 = scmp.ne.s32.totalorder %s322, %s325
      %p331 = scmp.eq.s32.totalorder %s24, 0
      %p332 = por %p330, %p331
      %p333 = scmp.ne.s32.totalorder %s322, %s325
      %p334 = scmp.eq.s32.totalorder %s29, 3
      %p335 = por %p333, %p334
      %p336 = scmp.ne.s32.totalorder %s325, %s326
      %p337 = scmp.eq.s32.totalorder %s29, 0
      %p338 = por %p336, %p337
      %p339 = scmp.ne.s32.totalorder %s325, %s326
      %p340 = scmp.eq.s32.totalorder %s30, 3
      %p341 = por %p339, %p340
      %p343 = scmp.ne.s32.totalorder %s326, %s342
      %p344 = scmp.eq.s32.totalorder %s30, 0
      %p345 = por %p343, %p344
      %s346 = ssub.s32 %s32, %s39
      %p347 = scmp.eq.s32.totalorder %s346, 0
      %s349 = sadd.s32 %s348, 1
      %s350 = scalar_select %p347, %s348, %s349
      %p353 = pneg %p347
      %p354 = scmp.eq.s32.totalorder %s24, 3
      %p355 = por %p353, %p354
      %p356 = scmp.ne.s32.totalorder %s348, %s351
      %p357 = scmp.eq.s32.totalorder %s24, 0
      %p358 = por %p356, %p357
      %p359 = scmp.ne.s32.totalorder %s348, %s351
      %p360 = scmp.eq.s32.totalorder %s29, 3
      %p361 = por %p359, %p360
      %p362 = scmp.ne.s32.totalorder %s351, %s352
      %p363 = scmp.eq.s32.totalorder %s29, 0
      %p364 = por %p362, %p363
      %p365 = scmp.ne.s32.totalorder %s351, %s352
      %p366 = scmp.eq.s32.totalorder %s30, 3
      %p367 = por %p365, %p366
      %p369 = scmp.ne.s32.totalorder %s352, %s368
      %p370 = scmp.eq.s32.totalorder %s30, 0
      %p371 = por %p369, %p370
      %s372 = ssub.s32 %s32, %s39
      %p373 = scmp.eq.s32.totalorder %s372, 0
      %s375 = sadd.s32 %s374, 1
      %s376 = scalar_select %p373, %s374, %s375
      %p379 = pneg %p373
      %p380 = scmp.eq.s32.totalorder %s24, 3
      %p381 = por %p379, %p380
      %p382 = scmp.ne.s32.totalorder %s374, %s377
      %p383 = scmp.eq.s32.totalorder %s24, 0
      %p384 = por %p382, %p383
      %p385 = scmp.ne.s32.totalorder %s374, %s377
      %p386 = scmp.eq.s32.totalorder %s29, 3
      %p387 = por %p385, %p386
      %p388 = scmp.ne.s32.totalorder %s377, %s378
      %p389 = scmp.eq.s32.totalorder %s29, 0
      %p390 = por %p388, %p389
      %p391 = scmp.ne.s32.totalorder %s377, %s378
      %p392 = scmp.eq.s32.totalorder %s30, 3
      %p393 = por %p391, %p392
      %p395 = scmp.ne.s32.totalorder %s378, %s394
      %p396 = scmp.eq.s32.totalorder %s30, 0
      %p397 = por %p395, %p396
      %s398 = ssub.s32 %s32, %s39
      %p399 = scmp.eq.s32.totalorder %s398, 0
      %s401 = sadd.s32 %s400, 1
      %s402 = scalar_select %p399, %s400, %s401
      %p405 = pneg %p399
      %p406 = scmp.eq.s32.totalorder %s24, 3
      %p407 = por %p405, %p406
      %p408 = scmp.ne.s32.totalorder %s400, %s403
      %p409 = scmp.eq.s32.totalorder %s24, 0
      %p410 = por %p408, %p409
      %p411 = scmp.ne.s32.totalorder %s400, %s403
      %p412 = scmp.eq.s32.totalorder %s29, 3
      %p413 = por %p411, %p412
      %p414 = scmp.ne.s32.totalorder %s403, %s404
      %p415 = scmp.eq.s32.totalorder %s29, 0
      %p416 = por %p414, %p415
      %p417 = scmp.ne.s32.totalorder %s403, %s404
      %p418 = scmp.eq.s32.totalorder %s30, 3
      %p419 = por %p417, %p418
      %p421 = scmp.ne.s32.totalorder %s404, %s420
      %p422 = scmp.eq.s32.totalorder %s30, 0
      %p423 = por %p421, %p422
      %s424 = ssub.s32 %s31, %s43
      %p425 = scmp.eq.s32.totalorder %s424, 0
      %s427 = sadd.s32 %s426, 1
      %s428 = scalar_select %p425, %s426, %s427
      %p431 = pneg %p425
      %p432 = scmp.eq.s32.totalorder %s24, 3
      %p433 = por %p431, %p432
      %p434 = scmp.ne.s32.totalorder %s426, %s429
      %p435 = scmp.eq.s32.totalorder %s24, 0
      %p436 = por %p434, %p435
      %p437 = scmp.ne.s32.totalorder %s426, %s429
      %p438 = scmp.eq.s32.totalorder %s29, 3
      %p439 = por %p437, %p438
      %p440 = scmp.ne.s32.totalorder %s429, %s430
      %p441 = scmp.eq.s32.totalorder %s29, 0
      %p442 = por %p440, %p441
      %p443 = scmp.ne.s32.totalorder %s429, %s430
      %p444 = scmp.eq.s32.totalorder %s30, 3
      %p445 = por %p443, %p444
      %p447 = scmp.ne.s32.totalorder %s430, %s446
      %p448 = scmp.eq.s32.totalorder %s30, 0
      %p449 = por %p447, %p448
      %p450 = scmp.le.s32.totalorder 1, %s24
      %p451 = scmp.lt.s32.totalorder %s24, 5
      %p452 = pnand %p450, %p451
      %p453 = pneg %p452
      // Predicated region
      $region9: #{tpu_custom_call.1} parent=5 // pred_check
        _
      $region10: #{tpu_custom_call.1} parent=5 // pred_check_branch
        %455 = sbr.rel (%p452) target = $region12
      $region11: #{tpu_custom_call.1} parent=5 // pred_region
        %s456 = ssub.s32 %s24, 1
        // Predicated region
        $region13: #{tpu_custom_call.1} parent=11 // pred_check
          %p457 = pneg %p83
        $region14: #{tpu_custom_call.1} parent=11 // pred_check_branch
          %459 = sbr.rel (%p457) target = $region16
        $region15: #{tpu_custom_call.1} parent=11 // pred_region
          _
        $region16: #{tpu_custom_call.1} parent=11 // pred_fallthru
          _
        // Predicated region
        $region17: #{tpu_custom_call.1} parent=11 // pred_check
          %p460 = pneg %p104
        $region18: #{tpu_custom_call.1} parent=11 // pred_check_branch
          %462 = sbr.rel (%p460) target = $region20
        $region19: #{tpu_custom_call.1} parent=11 // pred_region
          _
        $region20: #{tpu_custom_call.1} parent=11 // pred_fallthru
          _
      $region12: #{tpu_custom_call.1} parent=5 // pred_fallthru
        _
      %p463 = scmp.lt.s32.totalorder %s24, 4
      // Predicated region
      $region21: #{tpu_custom_call.1} parent=5 // pred_check
        %p464 = pneg %p463
      $region22: #{tpu_custom_call.1} parent=5 // pred_check_branch
        %466 = sbr.rel (%p464) target = $region24
      $region23: #{tpu_custom_call.1} parent=5 // pred_region
        // Predicated region
        $region25: #{tpu_custom_call.1} parent=23 // pred_check
          %p467 = pneg %p56
        $region26: #{tpu_custom_call.1} parent=23 // pred_check_branch
          %469 = sbr.rel (%p467) target = $region28
        $region27: #{tpu_custom_call.1} parent=23 // pred_region
          %p470 = scmp.lt.s32.totalorder %s31, 1
          %s471 = scalar_select %p470, %s31, 1
          %s472 = smul.addr %s471, 8
          %s473 = scalar_lea.vmem %s0, %s472
        $region28: #{tpu_custom_call.1} parent=23 // pred_fallthru
          _
        // Predicated region
        $region29: #{tpu_custom_call.1} parent=23 // pred_check
          %p474 = pneg %p124
        $region30: #{tpu_custom_call.1} parent=23 // pred_check_branch
          %476 = sbr.rel (%p474) target = $region32
        $region31: #{tpu_custom_call.1} parent=23 // pred_region
          %p477 = scmp.lt.s32.totalorder %s32, 1
          %s478 = scalar_select %p477, %s32, 1
          %s479 = smul.addr %s478, 192
          %s480 = smul.addr %s479, 4
          %s481 = scalar_lea.vmem %s3, %s480
        $region32: #{tpu_custom_call.1} parent=23 // pred_fallthru
          _
        // Predicated region
        $region33: #{tpu_custom_call.1} parent=23 // pred_check
          %p482 = pneg %p150
        $region34: #{tpu_custom_call.1} parent=23 // pred_check_branch
          %484 = sbr.rel (%p482) target = $region36
        $region35: #{tpu_custom_call.1} parent=23 // pred_region
          %p485 = scmp.lt.s32.totalorder %s32, 1
          %s486 = scalar_select %p485, %s32, 1
          %s487 = smul.addr %s486, 12
          %s488 = scalar_lea.vmem %s4, %s487
        $region36: #{tpu_custom_call.1} parent=23 // pred_fallthru
          _
        // Predicated region
        $region37: #{tpu_custom_call.1} parent=23 // pred_check
          %p489 = pneg %p176
        $region38: #{tpu_custom_call.1} parent=23 // pred_check_branch
          %491 = sbr.rel (%p489) target = $region40
        $region39: #{tpu_custom_call.1} parent=23 // pred_region
          %p492 = scmp.lt.s32.totalorder %s32, 1
          %s493 = scalar_select %p492, %s32, 1
          %s494 = smul.addr %s493, 16
          %s495 = smul.addr %s494, 4
          %s496 = scalar_lea.vmem %s5, %s495
        $region40: #{tpu_custom_call.1} parent=23 // pred_fallthru
          _
        // Predicated region
        $region41: #{tpu_custom_call.1} parent=23 // pred_check
          %p497 = pneg %p202
        $region42: #{tpu_custom_call.1} parent=23 // pred_check_branch
          %499 = sbr.rel (%p497) target = $region44
        $region43: #{tpu_custom_call.1} parent=23 // pred_region
          %p500 = scmp.lt.s32.totalorder %s32, 1
          %s501 = scalar_select %p500, %s32, 1
          %s502 = scalar_lea.vmem %s6, %s501
        $region44: #{tpu_custom_call.1} parent=23 // pred_fallthru
          _
        // Predicated region
        $region45: #{tpu_custom_call.1} parent=23 // pred_check
          %p503 = pneg %p228
        $region46: #{tpu_custom_call.1} parent=23 // pred_check_branch
          %505 = sbr.rel (%p503) target = $region48
        $region47: #{tpu_custom_call.1} parent=23 // pred_region
          %p506 = scmp.lt.s32.totalorder %s32, 1
          %s507 = scalar_select %p506, %s32, 1
          %s508 = scalar_lea.vmem %s7, %s507
        $region48: #{tpu_custom_call.1} parent=23 // pred_fallthru
          _
        // Predicated region
        $region49: #{tpu_custom_call.1} parent=23 // pred_check
          %p509 = pneg %p254
        $region50: #{tpu_custom_call.1} parent=23 // pred_check_branch
          %511 = sbr.rel (%p509) target = $region52
        $region51: #{tpu_custom_call.1} parent=23 // pred_region
          %p512 = scmp.lt.s32.totalorder %s32, 1
          %s513 = scalar_select %p512, %s32, 1
          %s514 = scalar_lea.vmem %s8, %s513
        $region52: #{tpu_custom_call.1} parent=23 // pred_fallthru
          _
        // Predicated region
        $region53: #{tpu_custom_call.1} parent=23 // pred_check
          %p515 = pneg %p280
        $region54: #{tpu_custom_call.1} parent=23 // pred_check_branch
          %517 = sbr.rel (%p515) target = $region56
        $region55: #{tpu_custom_call.1} parent=23 // pred_region
          %p518 = scmp.lt.s32.totalorder %s32, 1
          %s519 = scalar_select %p518, %s32, 1
          %s520 = smul.addr %s519, 32
          %s521 = smul.addr %s520, 4
          %s522 = scalar_lea.vmem %s9, %s521
        $region56: #{tpu_custom_call.1} parent=23 // pred_fallthru
          _
        // Predicated region
        $region57: #{tpu_custom_call.1} parent=23 // pred_check
          %p523 = pneg %p306
        $region58: #{tpu_custom_call.1} parent=23 // pred_check_branch
          %525 = sbr.rel (%p523) target = $region60
        $region59: #{tpu_custom_call.1} parent=23 // pred_region
          %p526 = scmp.lt.s32.totalorder %s32, 1
          %s527 = scalar_select %p526, %s32, 1
          %s528 = smul.addr %s527, 2
          %s529 = scalar_lea.vmem %s10, %s528
        $region60: #{tpu_custom_call.1} parent=23 // pred_fallthru
          _
        // Predicated region
        $region61: #{tpu_custom_call.1} parent=23 // pred_check
          %p530 = pneg %p332
        $region62: #{tpu_custom_call.1} parent=23 // pred_check_branch
          %532 = sbr.rel (%p530) target = $region64
        $region63: #{tpu_custom_call.1} parent=23 // pred_region
          %p533 = scmp.lt.s32.totalorder %s32, 1
          %s534 = scalar_select %p533, %s32, 1
          %s535 = smul.addr %s534, 32
          %s536 = smul.addr %s535, 4
          %s537 = scalar_lea.vmem %s11, %s536
        $region64: #{tpu_custom_call.1} parent=23 // pred_fallthru
          _
        // Predicated region
        $region65: #{tpu_custom_call.1} parent=23 // pred_check
          %p538 = pneg %p358
        $region66: #{tpu_custom_call.1} parent=23 // pred_check_branch
          %540 = sbr.rel (%p538) target = $region68
        $region67: #{tpu_custom_call.1} parent=23 // pred_region
          %p541 = scmp.lt.s32.totalorder %s32, 1
          %s542 = scalar_select %p541, %s32, 1
          %s543 = scalar_lea.vmem %s12, %s542
        $region68: #{tpu_custom_call.1} parent=23 // pred_fallthru
          _
        // Predicated region
        $region69: #{tpu_custom_call.1} parent=23 // pred_check
          %p544 = pneg %p384
        $region70: #{tpu_custom_call.1} parent=23 // pred_check_branch
          %546 = sbr.rel (%p544) target = $region72
        $region71: #{tpu_custom_call.1} parent=23 // pred_region
          %p547 = scmp.lt.s32.totalorder %s32, 1
          %s548 = scalar_select %p547, %s32, 1
          %s549 = scalar_lea.vmem %s13, %s548
        $region72: #{tpu_custom_call.1} parent=23 // pred_fallthru
          _
        // Predicated region
        $region73: #{tpu_custom_call.1} parent=23 // pred_check
          %p550 = pneg %p410
        $region74: #{tpu_custom_call.1} parent=23 // pred_check_branch
          %552 = sbr.rel (%p550) target = $region76
        $region75: #{tpu_custom_call.1} parent=23 // pred_region
          %p553 = scmp.lt.s32.totalorder %s32, 1
          %s554 = scalar_select %p553, %s32, 1
          %s555 = scalar_lea.vmem %s14, %s554
        $region76: #{tpu_custom_call.1} parent=23 // pred_fallthru
          _
      $region24: #{tpu_custom_call.1} parent=5 // pred_fallthru
        _
      %p556 = scmp.le.s32.totalorder 1, %s24
      %p557 = scmp.lt.s32.totalorder %s24, 5
      %p558 = pnand %p556, %p557
      %p559 = pneg %p558
      // Predicated region
      $region77: #{tpu_custom_call.1} parent=5 // pred_check
        _
      $region78: #{tpu_custom_call.1} parent=5 // pred_check_branch
        %561 = sbr.rel (%p558) target = $region80
      $region79: #{tpu_custom_call.1} parent=5 // pred_region
        %s562 = ssub.s32 %s24, 1
        %p563 = scmp.lt.s32.totalorder %s33, 1
        %s564 = scalar_select %p563, %s33, 1
        %s565 = smul.addr %s564, 8
        %s566 = scalar_lea.vmem %s0, %s565
        %p567 = pneg %p62
        %p568 = pneg %p59
        %p569 = pneg %p83
        %p570 = pneg %p80
        %p571 = pneg %p104
        %p572 = pneg %p101
        %p573 = scmp.lt.s32.totalorder %s34, 1
        %s574 = scalar_select %p573, %s34, 1
        %s575 = smul.addr %s574, 192
        %s576 = smul.addr %s575, 4
        %s577 = scalar_lea.vmem %s3, %s576
        %p578 = pneg %p130
        %p579 = pneg %p127
        %p580 = scmp.lt.s32.totalorder %s34, 1
        %s581 = scalar_select %p580, %s34, 1
        %s582 = smul.addr %s581, 12
        %s583 = scalar_lea.vmem %s4, %s582
        %p584 = pneg %p156
        %p585 = pneg %p153
        %p586 = scmp.lt.s32.totalorder %s34, 1
        %s587 = scalar_select %p586, %s34, 1
        %s588 = smul.addr %s587, 16
        %s589 = smul.addr %s588, 4
        %s590 = scalar_lea.vmem %s5, %s589
        %p591 = pneg %p182
        %p592 = pneg %p179
        %p593 = scmp.lt.s32.totalorder %s34, 1
        %s594 = scalar_select %p593, %s34, 1
        %s595 = scalar_lea.vmem %s6, %s594
        %p596 = pneg %p208
        %p597 = pneg %p205
        %p598 = scmp.lt.s32.totalorder %s34, 1
        %s599 = scalar_select %p598, %s34, 1
        %s600 = scalar_lea.vmem %s7, %s599
        %p601 = pneg %p234
        %p602 = pneg %p231
        %p603 = scmp.lt.s32.totalorder %s34, 1
        %s604 = scalar_select %p603, %s34, 1
        %s605 = scalar_lea.vmem %s8, %s604
        %p606 = pneg %p260
        %p607 = pneg %p257
        %p608 = scmp.lt.s32.totalorder %s34, 1
        %s609 = scalar_select %p608, %s34, 1
        %s610 = smul.addr %s609, 32
        %s611 = smul.addr %s610, 4
        %s612 = scalar_lea.vmem %s9, %s611
        %p613 = pneg %p286
        %p614 = pneg %p283
        %p615 = scmp.lt.s32.totalorder %s34, 1
        %s616 = scalar_select %p615, %s34, 1
        %s617 = smul.addr %s616, 2
        %s618 = scalar_lea.vmem %s10, %s617
        %p619 = pneg %p312
        %p620 = pneg %p309
        %p621 = scmp.lt.s32.totalorder %s34, 1
        %s622 = scalar_select %p621, %s34, 1
        %s623 = smul.addr %s622, 32
        %s624 = smul.addr %s623, 4
        %s625 = scalar_lea.vmem %s11, %s624
        %p626 = pneg %p338
        %p627 = pneg %p335
        %p628 = scmp.lt.s32.totalorder %s34, 1
        %s629 = scalar_select %p628, %s34, 1
        %s630 = scalar_lea.vmem %s12, %s629
        %p631 = pneg %p364
        %p632 = pneg %p361
        %p633 = scmp.lt.s32.totalorder %s34, 1
        %s634 = scalar_select %p633, %s34, 1
        %s635 = scalar_lea.vmem %s13, %s634
        %p636 = pneg %p390
        %p637 = pneg %p387
        %p638 = scmp.lt.s32.totalorder %s34, 1
        %s639 = scalar_select %p638, %s34, 1
        %s640 = scalar_lea.vmem %s14, %s639
        %p641 = pneg %p416
        %p642 = pneg %p413
        %p643 = pneg %p442
        %p644 = pneg %p439
        %s645 = sand.u32 %s429, 1
        %s646 = scalar_lea.sflag [#allocation4], %s645
        %s647 = sand.u32 %s429, 1
        %s648 = smul.addr %s647, 8
        %s649 = scalar_lea.vmem [#allocation3], %s648
        %p650 = scmp.lt.s32.totalorder %s33, 1
        %s651 = scalar_select %p650, %s33, 1
        %s652 = smul.addr %s651, 8
        %s653 = scalar_lea.vmem %s0, %s652
        %p654 = scmp.lt.s32.totalorder %s34, 1
        %s655 = scalar_select %p654, %s34, 1
        %s656 = smul.addr %s655, 192
        %s657 = smul.addr %s656, 4
        %s658 = scalar_lea.vmem %s3, %s657
        %p659 = scmp.lt.s32.totalorder %s34, 1
        %s660 = scalar_select %p659, %s34, 1
        %s661 = smul.addr %s660, 12
        %s662 = scalar_lea.vmem %s4, %s661
        %p663 = scmp.lt.s32.totalorder %s34, 1
        %s664 = scalar_select %p663, %s34, 1
        %s665 = smul.addr %s664, 16
        %s666 = smul.addr %s665, 4
        %s667 = scalar_lea.vmem %s5, %s666
        %p668 = scmp.lt.s32.totalorder %s34, 1
        %s669 = scalar_select %p668, %s34, 1
        %s670 = scalar_lea.vmem %s6, %s669
        %p671 = scmp.lt.s32.totalorder %s34, 1
        %s672 = scalar_select %p671, %s34, 1
        %s673 = scalar_lea.vmem %s7, %s672
        %p674 = scmp.lt.s32.totalorder %s34, 1
        %s675 = scalar_select %p674, %s34, 1
        %s676 = scalar_lea.vmem %s8, %s675
        %p677 = scmp.lt.s32.totalorder %s34, 1
        %s678 = scalar_select %p677, %s34, 1
        %s679 = smul.addr %s678, 32
        %s680 = smul.addr %s679, 4
        %s681 = scalar_lea.vmem %s9, %s680
        %p682 = scmp.lt.s32.totalorder %s34, 1
        %s683 = scalar_select %p682, %s34, 1
        %s684 = smul.addr %s683, 2
        %s685 = scalar_lea.vmem %s10, %s684
        %p686 = scmp.lt.s32.totalorder %s34, 1
        %s687 = scalar_select %p686, %s34, 1
        %s688 = smul.addr %s687, 32
        %s689 = smul.addr %s688, 4
        %s690 = scalar_lea.vmem %s11, %s689
        %p691 = scmp.lt.s32.totalorder %s34, 1
        %s692 = scalar_select %p691, %s34, 1
        %s693 = scalar_lea.vmem %s12, %s692
        %p694 = scmp.lt.s32.totalorder %s34, 1
        %s695 = scalar_select %p694, %s34, 1
        %s696 = scalar_lea.vmem %s13, %s695
        %p697 = scmp.lt.s32.totalorder %s34, 1
        %s698 = scalar_select %p697, %s34, 1
        %s699 = scalar_lea.vmem %s14, %s698
        %p701 = scmp.eq.s32.totalorder %s34, 0
        // Predicated region
        $region81: #{tpu_custom_call.1} parent=79 // pred_check
          %p702 = pneg %p701
        $region82: #{tpu_custom_call.1} parent=79 // pred_check_branch
          %704 = sbr.rel (%p702) target = $region84
        $region83: #{tpu_custom_call.1} parent=79 // pred_region
          %v705 = vld [vmem:[%s653] sm:$0xff]
          %v706 = vld [vmem:[%s1] sm:$0x1]
          %v707 = vld [vmem:[%s2] sm:$0x1]
          %708 = vadd.xlane.f32.xlu0 %v705
          %v709 = vpop.xlane.xlu0 %708
          %v710 = vrcp.pop 128.0
          %v711 = vmul.f32 128.0, %v710
          %v712 = vsub.f32 1.0, %v711
          %v713 = vmul.f32 %v710, %v712
          %v714 = vadd.f32 %v710, %v713
          %vm715 = vweird.f32 %v710
          %v716 = vsel %vm715, %v710, %v714
          %v717 = vmul.f32 %v709, %v716
          %v718 = vsub.f32 %v705, %v717
          %v719 = vmul.f32 %v718, %v718
          %720 = vadd.xlane.f32.xlu0 %v719
          %v721 = vpop.xlane.xlu0 %720
          %v722 = vmul.f32 %v721, %v716
          %v723 = vadd.f32 %v722, 1e-12
          %v724 = vrsqrt.pop %v723
          %v725 = vmul.f32 %v724, %v723
          %v726 = vmul.f32 %v725, %v724
          %v727 = vmul.f32 0.5, %v726
          %v728 = vsub.f32 1.5, %v727
          %v729 = vmul.f32 %v724, %v728
          %vm730 = vweird.f32 %v723
          %vm731 = vweird.f32 %v724
          %vm732 = vmor %vm730, %vm731
          %v733 = vsel %vm732, %v724, %v729
          %v734 = vmul.f32 %v718, %v733
          %v736 = vperm.slane %v706, 0
          %v738 = vmul.f32 %v734, %v736
          %v740 = vperm.slane %v707, 0
          %v742 = vadd.f32 %v738, %v740
          %743 = vst [vmem:[#allocation2] sm:$0xff] %v742
        $region84: #{tpu_custom_call.1} parent=79 // pred_fallthru
          _
        %v744 = vld [vmem:[#allocation2] sm:$0xff]
        %v745 = vpack.c.bf16 %v744, %v744
        %v746 = vld [vmem:[%s658] sm:$0xf]
        %v747 = vld [vmem:[%s658 + $0x4] sm:$0xf]
        %v748 = vld [vmem:[%s658 + $0x8] sm:$0xf]
        %v749 = vld [vmem:[%s658 + $0xc] sm:$0xf]
        %v750 = vld [vmem:[%s658 + $0x10] sm:$0xf]
        %v751 = vld [vmem:[%s658 + $0x14] sm:$0xf]
        %v752 = vld [vmem:[%s658 + $0x18] sm:$0xf]
        %v753 = vld [vmem:[%s658 + $0x1c] sm:$0xf]
        %v754 = vld [vmem:[%s658 + $0x20] sm:$0xf]
        %v755 = vld [vmem:[%s658 + $0x24] sm:$0xf]
        %v756 = vld [vmem:[%s658 + $0x28] sm:$0xf]
        %v757 = vld [vmem:[%s658 + $0x2c] sm:$0xf]
        %v758 = vld [vmem:[%s658 + $0x30] sm:$0xf]
        %v759 = vld [vmem:[%s658 + $0x34] sm:$0xf]
        %v760 = vld [vmem:[%s658 + $0x38] sm:$0xf]
        %v761 = vld [vmem:[%s658 + $0x3c] sm:$0xf]
        %v762 = vld [vmem:[%s658 + $0x40] sm:$0xf]
        %v763 = vld [vmem:[%s658 + $0x44] sm:$0xf]
        %v764 = vld [vmem:[%s658 + $0x48] sm:$0xf]
        %v765 = vld [vmem:[%s658 + $0x4c] sm:$0xf]
        %v766 = vld [vmem:[%s658 + $0x50] sm:$0xf]
        %v767 = vld [vmem:[%s658 + $0x54] sm:$0xf]
        %v768 = vld [vmem:[%s658 + $0x58] sm:$0xf]
        %v769 = vld [vmem:[%s658 + $0x5c] sm:$0xf]
        %v770 = vld [vmem:[%s658 + $0x60] sm:$0xf]
        %v771 = vld [vmem:[%s658 + $0x64] sm:$0xf]
        %v772 = vld [vmem:[%s658 + $0x68] sm:$0xf]
        %v773 = vld [vmem:[%s658 + $0x6c] sm:$0xf]
        %v774 = vld [vmem:[%s658 + $0x70] sm:$0xf]
        %v775 = vld [vmem:[%s658 + $0x74] sm:$0xf]
        %v776 = vld [vmem:[%s658 + $0x78] sm:$0xf]
        %v777 = vld [vmem:[%s658 + $0x7c] sm:$0xf]
        %v778 = vld [vmem:[%s658 + $0x80] sm:$0xf]
        %v779 = vld [vmem:[%s658 + $0x84] sm:$0xf]
        %v780 = vld [vmem:[%s658 + $0x88] sm:$0xf]
        %v781 = vld [vmem:[%s658 + $0x8c] sm:$0xf]
        %v782 = vld [vmem:[%s658 + $0x90] sm:$0xf]
        %v783 = vld [vmem:[%s658 + $0x94] sm:$0xf]
        %v784 = vld [vmem:[%s658 + $0x98] sm:$0xf]
        %v785 = vld [vmem:[%s658 + $0x9c] sm:$0xf]
        %v786 = vld [vmem:[%s658 + $0xa0] sm:$0xf]
        %v787 = vld [vmem:[%s658 + $0xa4] sm:$0xf]
        %v788 = vld [vmem:[%s658 + $0xa8] sm:$0xf]
        %v789 = vld [vmem:[%s658 + $0xac] sm:$0xf]
        %v790 = vld [vmem:[%s658 + $0xb0] sm:$0xf]
        %v791 = vld [vmem:[%s658 + $0xb4] sm:$0xf]
        %v792 = vld [vmem:[%s658 + $0xb8] sm:$0xf]
        %v793 = vld [vmem:[%s658 + $0xbc] sm:$0xf]
        %v794 = vld [vmem:[%s658 + $0xc0] sm:$0xf]
        %v795 = vld [vmem:[%s658 + $0xc4] sm:$0xf]
        %v796 = vld [vmem:[%s658 + $0xc8] sm:$0xf]
        %v797 = vld [vmem:[%s658 + $0xcc] sm:$0xf]
        %v798 = vld [vmem:[%s658 + $0xd0] sm:$0xf]
        %v799 = vld [vmem:[%s658 + $0xd4] sm:$0xf]
        %v800 = vld [vmem:[%s658 + $0xd8] sm:$0xf]
        %v801 = vld [vmem:[%s658 + $0xdc] sm:$0xf]
        %v802 = vld [vmem:[%s658 + $0xe0] sm:$0xf]
        %v803 = vld [vmem:[%s658 + $0xe4] sm:$0xf]
        %v804 = vld [vmem:[%s658 + $0xe8] sm:$0xf]
        %v805 = vld [vmem:[%s658 + $0xec] sm:$0xf]
        %v806 = vld [vmem:[%s658 + $0xf0] sm:$0xf]
        %v807 = vld [vmem:[%s658 + $0xf4] sm:$0xf]
        %v808 = vld [vmem:[%s658 + $0xf8] sm:$0xf]
        %v809 = vld [vmem:[%s658 + $0xfc] sm:$0xf]
        %v810 = vld [vmem:[%s658 + $0x100] sm:$0xf]
        %v811 = vld [vmem:[%s658 + $0x104] sm:$0xf]
        %v812 = vld [vmem:[%s658 + $0x108] sm:$0xf]
        %v813 = vld [vmem:[%s658 + $0x10c] sm:$0xf]
        %v814 = vld [vmem:[%s658 + $0x110] sm:$0xf]
        %v815 = vld [vmem:[%s658 + $0x114] sm:$0xf]
        %v816 = vld [vmem:[%s658 + $0x118] sm:$0xf]
        %v817 = vld [vmem:[%s658 + $0x11c] sm:$0xf]
        %v818 = vld [vmem:[%s658 + $0x120] sm:$0xf]
        %v819 = vld [vmem:[%s658 + $0x124] sm:$0xf]
        %v820 = vld [vmem:[%s658 + $0x128] sm:$0xf]
        %v821 = vld [vmem:[%s658 + $0x12c] sm:$0xf]
        %v822 = vld [vmem:[%s658 + $0x130] sm:$0xf]
        %v823 = vld [vmem:[%s658 + $0x134] sm:$0xf]
        %v824 = vld [vmem:[%s658 + $0x138] sm:$0xf]
        %v825 = vld [vmem:[%s658 + $0x13c] sm:$0xf]
        %v826 = vld [vmem:[%s658 + $0x140] sm:$0xf]
        %v827 = vld [vmem:[%s658 + $0x144] sm:$0xf]
        %v828 = vld [vmem:[%s658 + $0x148] sm:$0xf]
        %v829 = vld [vmem:[%s658 + $0x14c] sm:$0xf]
        %v830 = vld [vmem:[%s658 + $0x150] sm:$0xf]
        %v831 = vld [vmem:[%s658 + $0x154] sm:$0xf]
        %v832 = vld [vmem:[%s658 + $0x158] sm:$0xf]
        %v833 = vld [vmem:[%s658 + $0x15c] sm:$0xf]
        %v834 = vld [vmem:[%s658 + $0x160] sm:$0xf]
        %v835 = vld [vmem:[%s658 + $0x164] sm:$0xf]
        %v836 = vld [vmem:[%s658 + $0x168] sm:$0xf]
        %v837 = vld [vmem:[%s658 + $0x16c] sm:$0xf]
        %v838 = vld [vmem:[%s658 + $0x170] sm:$0xf]
        %v839 = vld [vmem:[%s658 + $0x174] sm:$0xf]
        %v840 = vld [vmem:[%s658 + $0x178] sm:$0xf]
        %v841 = vld [vmem:[%s658 + $0x17c] sm:$0xf]
        %v842 = vld [vmem:[%s658 + $0x180] sm:$0xf]
        %v843 = vld [vmem:[%s658 + $0x184] sm:$0xf]
        %v844 = vld [vmem:[%s658 + $0x188] sm:$0xf]
        %v845 = vld [vmem:[%s658 + $0x18c] sm:$0xf]
        %v846 = vld [vmem:[%s658 + $0x190] sm:$0xf]
        %v847 = vld [vmem:[%s658 + $0x194] sm:$0xf]
        %v848 = vld [vmem:[%s658 + $0x198] sm:$0xf]
        %v849 = vld [vmem:[%s658 + $0x19c] sm:$0xf]
        %v850 = vld [vmem:[%s658 + $0x1a0] sm:$0xf]
        %v851 = vld [vmem:[%s658 + $0x1a4] sm:$0xf]
        %v852 = vld [vmem:[%s658 + $0x1a8] sm:$0xf]
        %v853 = vld [vmem:[%s658 + $0x1ac] sm:$0xf]
        %v854 = vld [vmem:[%s658 + $0x1b0] sm:$0xf]
        %v855 = vld [vmem:[%s658 + $0x1b4] sm:$0xf]
        %v856 = vld [vmem:[%s658 + $0x1b8] sm:$0xf]
        %v857 = vld [vmem:[%s658 + $0x1bc] sm:$0xf]
        %v858 = vld [vmem:[%s658 + $0x1c0] sm:$0xf]
        %v859 = vld [vmem:[%s658 + $0x1c4] sm:$0xf]
        %v860 = vld [vmem:[%s658 + $0x1c8] sm:$0xf]
        %v861 = vld [vmem:[%s658 + $0x1cc] sm:$0xf]
        %v862 = vld [vmem:[%s658 + $0x1d0] sm:$0xf]
        %v863 = vld [vmem:[%s658 + $0x1d4] sm:$0xf]
        %v864 = vld [vmem:[%s658 + $0x1d8] sm:$0xf]
        %v865 = vld [vmem:[%s658 + $0x1dc] sm:$0xf]
        %v866 = vld [vmem:[%s658 + $0x1e0] sm:$0xf]
        %v867 = vld [vmem:[%s658 + $0x1e4] sm:$0xf]
        %v868 = vld [vmem:[%s658 + $0x1e8] sm:$0xf]
        %v869 = vld [vmem:[%s658 + $0x1ec] sm:$0xf]
        %v870 = vld [vmem:[%s658 + $0x1f0] sm:$0xf]
        %v871 = vld [vmem:[%s658 + $0x1f4] sm:$0xf]
        %v872 = vld [vmem:[%s658 + $0x1f8] sm:$0xf]
        %v873 = vld [vmem:[%s658 + $0x1fc] sm:$0xf]
        %v874 = vld [vmem:[%s658 + $0x200] sm:$0xf]
        %v875 = vld [vmem:[%s658 + $0x204] sm:$0xf]
        %v876 = vld [vmem:[%s658 + $0x208] sm:$0xf]
        %v877 = vld [vmem:[%s658 + $0x20c] sm:$0xf]
        %v878 = vld [vmem:[%s658 + $0x210] sm:$0xf]
        %v879 = vld [vmem:[%s658 + $0x214] sm:$0xf]
        %v880 = vld [vmem:[%s658 + $0x218] sm:$0xf]
        %v881 = vld [vmem:[%s658 + $0x21c] sm:$0xf]
        %v882 = vld [vmem:[%s658 + $0x220] sm:$0xf]
        %v883 = vld [vmem:[%s658 + $0x224] sm:$0xf]
        %v884 = vld [vmem:[%s658 + $0x228] sm:$0xf]
        %v885 = vld [vmem:[%s658 + $0x22c] sm:$0xf]
        %v886 = vld [vmem:[%s658 + $0x230] sm:$0xf]
        %v887 = vld [vmem:[%s658 + $0x234] sm:$0xf]
        %v888 = vld [vmem:[%s658 + $0x238] sm:$0xf]
        %v889 = vld [vmem:[%s658 + $0x23c] sm:$0xf]
        %v890 = vld [vmem:[%s658 + $0x240] sm:$0xf]
        %v891 = vld [vmem:[%s658 + $0x244] sm:$0xf]
        %v892 = vld [vmem:[%s658 + $0x248] sm:$0xf]
        %v893 = vld [vmem:[%s658 + $0x24c] sm:$0xf]
        %v894 = vld [vmem:[%s658 + $0x250] sm:$0xf]
        %v895 = vld [vmem:[%s658 + $0x254] sm:$0xf]
        %v896 = vld [vmem:[%s658 + $0x258] sm:$0xf]
        %v897 = vld [vmem:[%s658 + $0x25c] sm:$0xf]
        %v898 = vld [vmem:[%s658 + $0x260] sm:$0xf]
        %v899 = vld [vmem:[%s658 + $0x264] sm:$0xf]
        %v900 = vld [vmem:[%s658 + $0x268] sm:$0xf]
        %v901 = vld [vmem:[%s658 + $0x26c] sm:$0xf]
        %v902 = vld [vmem:[%s658 + $0x270] sm:$0xf]
        %v903 = vld [vmem:[%s658 + $0x274] sm:$0xf]
        %v904 = vld [vmem:[%s658 + $0x278] sm:$0xf]
        %v905 = vld [vmem:[%s658 + $0x27c] sm:$0xf]
        %v906 = vld [vmem:[%s658 + $0x280] sm:$0xf]
        %v907 = vld [vmem:[%s658 + $0x284] sm:$0xf]
        %v908 = vld [vmem:[%s658 + $0x288] sm:$0xf]
        %v909 = vld [vmem:[%s658 + $0x28c] sm:$0xf]
        %v910 = vld [vmem:[%s658 + $0x290] sm:$0xf]
        %v911 = vld [vmem:[%s658 + $0x294] sm:$0xf]
        %v912 = vld [vmem:[%s658 + $0x298] sm:$0xf]
        %v913 = vld [vmem:[%s658 + $0x29c] sm:$0xf]
        %v914 = vld [vmem:[%s658 + $0x2a0] sm:$0xf]
        %v915 = vld [vmem:[%s658 + $0x2a4] sm:$0xf]
        %v916 = vld [vmem:[%s658 + $0x2a8] sm:$0xf]
        %v917 = vld [vmem:[%s658 + $0x2ac] sm:$0xf]
        %v918 = vld [vmem:[%s658 + $0x2b0] sm:$0xf]
        %v919 = vld [vmem:[%s658 + $0x2b4] sm:$0xf]
        %v920 = vld [vmem:[%s658 + $0x2b8] sm:$0xf]
        %v921 = vld [vmem:[%s658 + $0x2bc] sm:$0xf]
        %v922 = vld [vmem:[%s658 + $0x2c0] sm:$0xf]
        %v923 = vld [vmem:[%s658 + $0x2c4] sm:$0xf]
        %v924 = vld [vmem:[%s658 + $0x2c8] sm:$0xf]
        %v925 = vld [vmem:[%s658 + $0x2cc] sm:$0xf]
        %v926 = vld [vmem:[%s658 + $0x2d0] sm:$0xf]
        %v927 = vld [vmem:[%s658 + $0x2d4] sm:$0xf]
        %v928 = vld [vmem:[%s658 + $0x2d8] sm:$0xf]
        %v929 = vld [vmem:[%s658 + $0x2dc] sm:$0xf]
        %v930 = vld [vmem:[%s658 + $0x2e0] sm:$0xf]
        %v931 = vld [vmem:[%s658 + $0x2e4] sm:$0xf]
        %v932 = vld [vmem:[%s658 + $0x2e8] sm:$0xf]
        %v933 = vld [vmem:[%s658 + $0x2ec] sm:$0xf]
        %v934 = vld [vmem:[%s658 + $0x2f0] sm:$0xf]
        %v935 = vld [vmem:[%s658 + $0x2f4] sm:$0xf]
        %v936 = vld [vmem:[%s658 + $0x2f8] sm:$0xf]
        %v937 = vld [vmem:[%s658 + $0x2fc] sm:$0xf]
        %v938 = vld [vmem:[%s662] sm:$0x1]
        %v939 = vld [vmem:[%s662 + $0x1] sm:$0x1]
        %v940 = vld [vmem:[%s662 + $0x2] sm:$0x1]
        %v941 = vld [vmem:[%s662 + $0x3] sm:$0x1]
        %v942 = vld [vmem:[%s662 + $0x4] sm:$0x1]
        %v943 = vld [vmem:[%s662 + $0x5] sm:$0x1]
        %v944 = vld [vmem:[%s662 + $0x6] sm:$0x1]
        %v945 = vld [vmem:[%s662 + $0x7] sm:$0x1]
        %v946 = vld [vmem:[%s662 + $0x8] sm:$0x1]
        %v947 = vld [vmem:[%s662 + $0x9] sm:$0x1]
        %v948 = vld [vmem:[%s662 + $0xa] sm:$0x1]
        %v949 = vld [vmem:[%s662 + $0xb] sm:$0x1]
        %v962 = vperm.slane %v938, 0
        %v963 = vperm.slane %v939, 0
        %v964 = vperm.slane %v940, 0
        %v965 = vperm.slane %v941, 0
        %v966 = vperm.slane %v942, 0
        %v967 = vperm.slane %v943, 0
        %v968 = vperm.slane %v944, 0
        %v969 = vperm.slane %v945, 0
        %v970 = vperm.slane %v946, 0
        %v971 = vperm.slane %v947, 0
        %v972 = vperm.slane %v948, 0
        %v973 = vperm.slane %v949, 0
        %v1002 = vunpack.c.l.b16 %v746
        %v1003 = vunpack.c.l.b16 %v747
        %v1004 = vunpack.c.l.b16 %v748
        %v1005 = vunpack.c.l.b16 %v749
        %v1006 = vunpack.c.l.b16 %v750
        %v1007 = vunpack.c.l.b16 %v751
        %v1008 = vunpack.c.l.b16 %v752
        %v1009 = vunpack.c.l.b16 %v753
        %v1010 = vunpack.c.l.b16 %v754
        %v1011 = vunpack.c.l.b16 %v755
        %v1012 = vunpack.c.l.b16 %v756
        %v1013 = vunpack.c.l.b16 %v757
        %v1014 = vunpack.c.l.b16 %v758
        %v1015 = vunpack.c.l.b16 %v759
        %v1016 = vunpack.c.l.b16 %v760
        %v1017 = vunpack.c.l.b16 %v761
        %v1018 = vpack.c.b16 %v1003, %v1002
        %v1019 = vpack.c.b16 %v1005, %v1004
        %v1020 = vpack.c.b16 %v1007, %v1006
        %v1021 = vpack.c.b16 %v1009, %v1008
        %v1022 = vpack.c.b16 %v1011, %v1010
        %v1023 = vpack.c.b16 %v1013, %v1012
        %v1024 = vpack.c.b16 %v1015, %v1014
        %v1025 = vpack.c.b16 %v1017, %v1016
        %1034 = vmatpush.bf16.msra.mxu0 %v1025
        %1035 = vmatpush.bf16.msra.mxu0 %v1024
        %1036 = vmatpush.bf16.msra.mxu0 %v1023
        %1037 = vmatpush.bf16.msra.mxu0 %v1022
        %1038 = vmatpush.bf16.msra.mxu0 %v1021
        %1039 = vmatpush.bf16.msra.mxu0 %v1020
        %1040 = vmatpush.bf16.msra.mxu0 %v1019
        %1041 = vmatpush.bf16.msra.mxu0 %v1018
        %1042 = vmatmul.bf16.gmra.mxu0 %v745
        %v1043 = vpop.f32.mrf.mxu0
        %v1044 = vadd.f32 %v962, %v1043
        %v1045 = vpop.f32.mrf.mxu0
        %1046 = vdwg.mxu0
        %v1063 = vunpack.c.l.b16 %v762
        %v1064 = vunpack.c.l.b16 %v763
        %v1065 = vunpack.c.l.b16 %v764
        %v1066 = vunpack.c.l.b16 %v765
        %v1067 = vunpack.c.l.b16 %v766
        %v1068 = vunpack.c.l.b16 %v767
        %v1069 = vunpack.c.l.b16 %v768
        %v1070 = vunpack.c.l.b16 %v769
        %v1071 = vunpack.c.l.b16 %v770
        %v1072 = vunpack.c.l.b16 %v771
        %v1073 = vunpack.c.l.b16 %v772
        %v1074 = vunpack.c.l.b16 %v773
        %v1075 = vunpack.c.l.b16 %v774
        %v1076 = vunpack.c.l.b16 %v775
        %v1077 = vunpack.c.l.b16 %v776
        %v1078 = vunpack.c.l.b16 %v777
        %v1079 = vpack.c.b16 %v1064, %v1063
        %v1080 = vpack.c.b16 %v1066, %v1065
        %v1081 = vpack.c.b16 %v1068, %v1067
        %v1082 = vpack.c.b16 %v1070, %v1069
        %v1083 = vpack.c.b16 %v1072, %v1071
        %v1084 = vpack.c.b16 %v1074, %v1073
        %v1085 = vpack.c.b16 %v1076, %v1075
        %v1086 = vpack.c.b16 %v1078, %v1077
        %1095 = vmatpush.bf16.msra.mxu0 %v1086
        %1096 = vmatpush.bf16.msra.mxu0 %v1085
        %1097 = vmatpush.bf16.msra.mxu0 %v1084
        %1098 = vmatpush.bf16.msra.mxu0 %v1083
        %1099 = vmatpush.bf16.msra.mxu0 %v1082
        %1100 = vmatpush.bf16.msra.mxu0 %v1081
        %1101 = vmatpush.bf16.msra.mxu0 %v1080
        %1102 = vmatpush.bf16.msra.mxu0 %v1079
        %1103 = vmatmul.bf16.gmra.mxu0 %v745
        %v1104 = vpop.f32.mrf.mxu0
        %v1105 = vadd.f32 %v963, %v1104
        %v1106 = vpop.f32.mrf.mxu0
        %1107 = vdwg.mxu0
        %v1124 = vunpack.c.l.b16 %v778
        %v1125 = vunpack.c.l.b16 %v779
        %v1126 = vunpack.c.l.b16 %v780
        %v1127 = vunpack.c.l.b16 %v781
        %v1128 = vunpack.c.l.b16 %v782
        %v1129 = vunpack.c.l.b16 %v783
        %v1130 = vunpack.c.l.b16 %v784
        %v1131 = vunpack.c.l.b16 %v785
        %v1132 = vunpack.c.l.b16 %v786
        %v1133 = vunpack.c.l.b16 %v787
        %v1134 = vunpack.c.l.b16 %v788
        %v1135 = vunpack.c.l.b16 %v789
        %v1136 = vunpack.c.l.b16 %v790
        %v1137 = vunpack.c.l.b16 %v791
        %v1138 = vunpack.c.l.b16 %v792
        %v1139 = vunpack.c.l.b16 %v793
        %v1140 = vpack.c.b16 %v1125, %v1124
        %v1141 = vpack.c.b16 %v1127, %v1126
        %v1142 = vpack.c.b16 %v1129, %v1128
        %v1143 = vpack.c.b16 %v1131, %v1130
        %v1144 = vpack.c.b16 %v1133, %v1132
        %v1145 = vpack.c.b16 %v1135, %v1134
        %v1146 = vpack.c.b16 %v1137, %v1136
        %v1147 = vpack.c.b16 %v1139, %v1138
        %1156 = vmatpush.bf16.msra.mxu0 %v1147
        %1157 = vmatpush.bf16.msra.mxu0 %v1146
        %1158 = vmatpush.bf16.msra.mxu0 %v1145
        %1159 = vmatpush.bf16.msra.mxu0 %v1144
        %1160 = vmatpush.bf16.msra.mxu0 %v1143
        %1161 = vmatpush.bf16.msra.mxu0 %v1142
        %1162 = vmatpush.bf16.msra.mxu0 %v1141
        %1163 = vmatpush.bf16.msra.mxu0 %v1140
        %1164 = vmatmul.bf16.gmra.mxu0 %v745
        %v1165 = vpop.f32.mrf.mxu0
        %v1166 = vadd.f32 %v964, %v1165
        %v1167 = vpop.f32.mrf.mxu0
        %1168 = vdwg.mxu0
        %v1185 = vunpack.c.l.b16 %v794
        %v1186 = vunpack.c.l.b16 %v795
        %v1187 = vunpack.c.l.b16 %v796
        %v1188 = vunpack.c.l.b16 %v797
        %v1189 = vunpack.c.l.b16 %v798
        %v1190 = vunpack.c.l.b16 %v799
        %v1191 = vunpack.c.l.b16 %v800
        %v1192 = vunpack.c.l.b16 %v801
        %v1193 = vunpack.c.l.b16 %v802
        %v1194 = vunpack.c.l.b16 %v803
        %v1195 = vunpack.c.l.b16 %v804
        %v1196 = vunpack.c.l.b16 %v805
        %v1197 = vunpack.c.l.b16 %v806
        %v1198 = vunpack.c.l.b16 %v807
        %v1199 = vunpack.c.l.b16 %v808
        %v1200 = vunpack.c.l.b16 %v809
        %v1201 = vpack.c.b16 %v1186, %v1185
        %v1202 = vpack.c.b16 %v1188, %v1187
        %v1203 = vpack.c.b16 %v1190, %v1189
        %v1204 = vpack.c.b16 %v1192, %v1191
        %v1205 = vpack.c.b16 %v1194, %v1193
        %v1206 = vpack.c.b16 %v1196, %v1195
        %v1207 = vpack.c.b16 %v1198, %v1197
        %v1208 = vpack.c.b16 %v1200, %v1199
        %1217 = vmatpush.bf16.msra.mxu0 %v1208
        %1218 = vmatpush.bf16.msra.mxu0 %v1207
        %1219 = vmatpush.bf16.msra.mxu0 %v1206
        %1220 = vmatpush.bf16.msra.mxu0 %v1205
        %1221 = vmatpush.bf16.msra.mxu0 %v1204
        %1222 = vmatpush.bf16.msra.mxu0 %v1203
        %1223 = vmatpush.bf16.msra.mxu0 %v1202
        %1224 = vmatpush.bf16.msra.mxu0 %v1201
        %1225 = vmatmul.bf16.gmra.mxu0 %v745
        %v1226 = vpop.f32.mrf.mxu0
        %v1227 = vadd.f32 %v965, %v1226
        %v1228 = vpop.f32.mrf.mxu0
        %1229 = vdwg.mxu0
        %v1246 = vunpack.c.l.b16 %v810
        %v1247 = vunpack.c.l.b16 %v811
        %v1248 = vunpack.c.l.b16 %v812
        %v1249 = vunpack.c.l.b16 %v813
        %v1250 = vunpack.c.l.b16 %v814
        %v1251 = vunpack.c.l.b16 %v815
        %v1252 = vunpack.c.l.b16 %v816
        %v1253 = vunpack.c.l.b16 %v817
        %v1254 = vunpack.c.l.b16 %v818
        %v1255 = vunpack.c.l.b16 %v819
        %v1256 = vunpack.c.l.b16 %v820
        %v1257 = vunpack.c.l.b16 %v821
        %v1258 = vunpack.c.l.b16 %v822
        %v1259 = vunpack.c.l.b16 %v823
        %v1260 = vunpack.c.l.b16 %v824
        %v1261 = vunpack.c.l.b16 %v825
        %v1262 = vpack.c.b16 %v1247, %v1246
        %v1263 = vpack.c.b16 %v1249, %v1248
        %v1264 = vpack.c.b16 %v1251, %v1250
        %v1265 = vpack.c.b16 %v1253, %v1252
        %v1266 = vpack.c.b16 %v1255, %v1254
        %v1267 = vpack.c.b16 %v1257, %v1256
        %v1268 = vpack.c.b16 %v1259, %v1258
        %v1269 = vpack.c.b16 %v1261, %v1260
        %1278 = vmatpush.bf16.msra.mxu0 %v1269
        %1279 = vmatpush.bf16.msra.mxu0 %v1268
        %1280 = vmatpush.bf16.msra.mxu0 %v1267
        %1281 = vmatpush.bf16.msra.mxu0 %v1266
        %1282 = vmatpush.bf16.msra.mxu0 %v1265
        %1283 = vmatpush.bf16.msra.mxu0 %v1264
        %1284 = vmatpush.bf16.msra.mxu0 %v1263
        %1285 = vmatpush.bf16.msra.mxu0 %v1262
        %1286 = vmatmul.bf16.gmra.mxu0 %v745
        %v1287 = vpop.f32.mrf.mxu0
        %v1288 = vadd.f32 %v966, %v1287
        %v1289 = vpop.f32.mrf.mxu0
        %1290 = vdwg.mxu0
        %v1307 = vunpack.c.l.b16 %v826
        %v1308 = vunpack.c.l.b16 %v827
        %v1309 = vunpack.c.l.b16 %v828
        %v1310 = vunpack.c.l.b16 %v829
        %v1311 = vunpack.c.l.b16 %v830
        %v1312 = vunpack.c.l.b16 %v831
        %v1313 = vunpack.c.l.b16 %v832
        %v1314 = vunpack.c.l.b16 %v833
        %v1315 = vunpack.c.l.b16 %v834
        %v1316 = vunpack.c.l.b16 %v835
        %v1317 = vunpack.c.l.b16 %v836
        %v1318 = vunpack.c.l.b16 %v837
        %v1319 = vunpack.c.l.b16 %v838
        %v1320 = vunpack.c.l.b16 %v839
        %v1321 = vunpack.c.l.b16 %v840
        %v1322 = vunpack.c.l.b16 %v841
        %v1323 = vpack.c.b16 %v1308, %v1307
        %v1324 = vpack.c.b16 %v1310, %v1309
        %v1325 = vpack.c.b16 %v1312, %v1311
        %v1326 = vpack.c.b16 %v1314, %v1313
        %v1327 = vpack.c.b16 %v1316, %v1315
        %v1328 = vpack.c.b16 %v1318, %v1317
        %v1329 = vpack.c.b16 %v1320, %v1319
        %v1330 = vpack.c.b16 %v1322, %v1321
        %1339 = vmatpush.bf16.msra.mxu0 %v1330
        %1340 = vmatpush.bf16.msra.mxu0 %v1329
        %1341 = vmatpush.bf16.msra.mxu0 %v1328
        %1342 = vmatpush.bf16.msra.mxu0 %v1327
        %1343 = vmatpush.bf16.msra.mxu0 %v1326
        %1344 = vmatpush.bf16.msra.mxu0 %v1325
        %1345 = vmatpush.bf16.msra.mxu0 %v1324
        %1346 = vmatpush.bf16.msra.mxu0 %v1323
        %1347 = vmatmul.bf16.gmra.mxu0 %v745
        %v1348 = vpop.f32.mrf.mxu0
        %v1349 = vadd.f32 %v967, %v1348
        %v1350 = vpop.f32.mrf.mxu0
        %1351 = vdwg.mxu0
        %v1368 = vunpack.c.l.b16 %v842
        %v1369 = vunpack.c.l.b16 %v843
        %v1370 = vunpack.c.l.b16 %v844
        %v1371 = vunpack.c.l.b16 %v845
        %v1372 = vunpack.c.l.b16 %v846
        %v1373 = vunpack.c.l.b16 %v847
        %v1374 = vunpack.c.l.b16 %v848
        %v1375 = vunpack.c.l.b16 %v849
        %v1376 = vunpack.c.l.b16 %v850
        %v1377 = vunpack.c.l.b16 %v851
        %v1378 = vunpack.c.l.b16 %v852
        %v1379 = vunpack.c.l.b16 %v853
        %v1380 = vunpack.c.l.b16 %v854
        %v1381 = vunpack.c.l.b16 %v855
        %v1382 = vunpack.c.l.b16 %v856
        %v1383 = vunpack.c.l.b16 %v857
        %v1384 = vpack.c.b16 %v1369, %v1368
        %v1385 = vpack.c.b16 %v1371, %v1370
        %v1386 = vpack.c.b16 %v1373, %v1372
        %v1387 = vpack.c.b16 %v1375, %v1374
        %v1388 = vpack.c.b16 %v1377, %v1376
        %v1389 = vpack.c.b16 %v1379, %v1378
        %v1390 = vpack.c.b16 %v1381, %v1380
        %v1391 = vpack.c.b16 %v1383, %v1382
        %1400 = vmatpush.bf16.msra.mxu0 %v1391
        %1401 = vmatpush.bf16.msra.mxu0 %v1390
        %1402 = vmatpush.bf16.msra.mxu0 %v1389
        %1403 = vmatpush.bf16.msra.mxu0 %v1388
        %1404 = vmatpush.bf16.msra.mxu0 %v1387
        %1405 = vmatpush.bf16.msra.mxu0 %v1386
        %1406 = vmatpush.bf16.msra.mxu0 %v1385
        %1407 = vmatpush.bf16.msra.mxu0 %v1384
        %1408 = vmatmul.bf16.gmra.mxu0 %v745
        %v1409 = vpop.f32.mrf.mxu0
        %v1410 = vadd.f32 %v968, %v1409
        %v1411 = vpop.f32.mrf.mxu0
        %1412 = vdwg.mxu0
        %v1429 = vunpack.c.l.b16 %v858
        %v1430 = vunpack.c.l.b16 %v859
        %v1431 = vunpack.c.l.b16 %v860
        %v1432 = vunpack.c.l.b16 %v861
        %v1433 = vunpack.c.l.b16 %v862
        %v1434 = vunpack.c.l.b16 %v863
        %v1435 = vunpack.c.l.b16 %v864
        %v1436 = vunpack.c.l.b16 %v865
        %v1437 = vunpack.c.l.b16 %v866
        %v1438 = vunpack.c.l.b16 %v867
        %v1439 = vunpack.c.l.b16 %v868
        %v1440 = vunpack.c.l.b16 %v869
        %v1441 = vunpack.c.l.b16 %v870
        %v1442 = vunpack.c.l.b16 %v871
        %v1443 = vunpack.c.l.b16 %v872
        %v1444 = vunpack.c.l.b16 %v873
        %v1445 = vpack.c.b16 %v1430, %v1429
        %v1446 = vpack.c.b16 %v1432, %v1431
        %v1447 = vpack.c.b16 %v1434, %v1433
        %v1448 = vpack.c.b16 %v1436, %v1435
        %v1449 = vpack.c.b16 %v1438, %v1437
        %v1450 = vpack.c.b16 %v1440, %v1439
        %v1451 = vpack.c.b16 %v1442, %v1441
        %v1452 = vpack.c.b16 %v1444, %v1443
        %1461 = vmatpush.bf16.msra.mxu0 %v1452
        %1462 = vmatpush.bf16.msra.mxu0 %v1451
        %1463 = vmatpush.bf16.msra.mxu0 %v1450
        %1464 = vmatpush.bf16.msra.mxu0 %v1449
        %1465 = vmatpush.bf16.msra.mxu0 %v1448
        %1466 = vmatpush.bf16.msra.mxu0 %v1447
        %1467 = vmatpush.bf16.msra.mxu0 %v1446
        %1468 = vmatpush.bf16.msra.mxu0 %v1445
        %1469 = vmatmul.bf16.gmra.mxu0 %v745
        %v1470 = vpop.f32.mrf.mxu0
        %v1471 = vadd.f32 %v969, %v1470
        %v1472 = vpop.f32.mrf.mxu0
        %1473 = vdwg.mxu0
        %v1490 = vunpack.c.l.b16 %v874
        %v1491 = vunpack.c.l.b16 %v875
        %v1492 = vunpack.c.l.b16 %v876
        %v1493 = vunpack.c.l.b16 %v877
        %v1494 = vunpack.c.l.b16 %v878
        %v1495 = vunpack.c.l.b16 %v879
        %v1496 = vunpack.c.l.b16 %v880
        %v1497 = vunpack.c.l.b16 %v881
        %v1498 = vunpack.c.l.b16 %v882
        %v1499 = vunpack.c.l.b16 %v883
        %v1500 = vunpack.c.l.b16 %v884
        %v1501 = vunpack.c.l.b16 %v885
        %v1502 = vunpack.c.l.b16 %v886
        %v1503 = vunpack.c.l.b16 %v887
        %v1504 = vunpack.c.l.b16 %v888
        %v1505 = vunpack.c.l.b16 %v889
        %v1506 = vpack.c.b16 %v1491, %v1490
        %v1507 = vpack.c.b16 %v1493, %v1492
        %v1508 = vpack.c.b16 %v1495, %v1494
        %v1509 = vpack.c.b16 %v1497, %v1496
        %v1510 = vpack.c.b16 %v1499, %v1498
        %v1511 = vpack.c.b16 %v1501, %v1500
        %v1512 = vpack.c.b16 %v1503, %v1502
        %v1513 = vpack.c.b16 %v1505, %v1504
        %1522 = vmatpush.bf16.msra.mxu0 %v1513
        %1523 = vmatpush.bf16.msra.mxu0 %v1512
        %1524 = vmatpush.bf16.msra.mxu0 %v1511
        %1525 = vmatpush.bf16.msra.mxu0 %v1510
        %1526 = vmatpush.bf16.msra.mxu0 %v1509
        %1527 = vmatpush.bf16.msra.mxu0 %v1508
        %1528 = vmatpush.bf16.msra.mxu0 %v1507
        %1529 = vmatpush.bf16.msra.mxu0 %v1506
        %1530 = vmatmul.bf16.gmra.mxu0 %v745
        %v1531 = vpop.f32.mrf.mxu0
        %v1532 = vadd.f32 %v970, %v1531
        %v1533 = vpop.f32.mrf.mxu0
        %1534 = vdwg.mxu0
        %v1551 = vunpack.c.l.b16 %v890
        %v1552 = vunpack.c.l.b16 %v891
        %v1553 = vunpack.c.l.b16 %v892
        %v1554 = vunpack.c.l.b16 %v893
        %v1555 = vunpack.c.l.b16 %v894
        %v1556 = vunpack.c.l.b16 %v895
        %v1557 = vunpack.c.l.b16 %v896
        %v1558 = vunpack.c.l.b16 %v897
        %v1559 = vunpack.c.l.b16 %v898
        %v1560 = vunpack.c.l.b16 %v899
        %v1561 = vunpack.c.l.b16 %v900
        %v1562 = vunpack.c.l.b16 %v901
        %v1563 = vunpack.c.l.b16 %v902
        %v1564 = vunpack.c.l.b16 %v903
        %v1565 = vunpack.c.l.b16 %v904
        %v1566 = vunpack.c.l.b16 %v905
        %v1567 = vpack.c.b16 %v1552, %v1551
        %v1568 = vpack.c.b16 %v1554, %v1553
        %v1569 = vpack.c.b16 %v1556, %v1555
        %v1570 = vpack.c.b16 %v1558, %v1557
        %v1571 = vpack.c.b16 %v1560, %v1559
        %v1572 = vpack.c.b16 %v1562, %v1561
        %v1573 = vpack.c.b16 %v1564, %v1563
        %v1574 = vpack.c.b16 %v1566, %v1565
        %1583 = vmatpush.bf16.msra.mxu0 %v1574
        %1584 = vmatpush.bf16.msra.mxu0 %v1573
        %1585 = vmatpush.bf16.msra.mxu0 %v1572
        %1586 = vmatpush.bf16.msra.mxu0 %v1571
        %1587 = vmatpush.bf16.msra.mxu0 %v1570
        %1588 = vmatpush.bf16.msra.mxu0 %v1569
        %1589 = vmatpush.bf16.msra.mxu0 %v1568
        %1590 = vmatpush.bf16.msra.mxu0 %v1567
        %1591 = vmatmul.bf16.gmra.mxu0 %v745
        %v1592 = vpop.f32.mrf.mxu0
        %v1593 = vadd.f32 %v971, %v1592
        %v1594 = vpop.f32.mrf.mxu0
        %1595 = vdwg.mxu0
        %v1612 = vunpack.c.l.b16 %v906
        %v1613 = vunpack.c.l.b16 %v907
        %v1614 = vunpack.c.l.b16 %v908
        %v1615 = vunpack.c.l.b16 %v909
        %v1616 = vunpack.c.l.b16 %v910
        %v1617 = vunpack.c.l.b16 %v911
        %v1618 = vunpack.c.l.b16 %v912
        %v1619 = vunpack.c.l.b16 %v913
        %v1620 = vunpack.c.l.b16 %v914
        %v1621 = vunpack.c.l.b16 %v915
        %v1622 = vunpack.c.l.b16 %v916
        %v1623 = vunpack.c.l.b16 %v917
        %v1624 = vunpack.c.l.b16 %v918
        %v1625 = vunpack.c.l.b16 %v919
        %v1626 = vunpack.c.l.b16 %v920
        %v1627 = vunpack.c.l.b16 %v921
        %v1628 = vpack.c.b16 %v1613, %v1612
        %v1629 = vpack.c.b16 %v1615, %v1614
        %v1630 = vpack.c.b16 %v1617, %v1616
        %v1631 = vpack.c.b16 %v1619, %v1618
        %v1632 = vpack.c.b16 %v1621, %v1620
        %v1633 = vpack.c.b16 %v1623, %v1622
        %v1634 = vpack.c.b16 %v1625, %v1624
        %v1635 = vpack.c.b16 %v1627, %v1626
        %1644 = vmatpush.bf16.msra.mxu0 %v1635
        %1645 = vmatpush.bf16.msra.mxu0 %v1634
        %1646 = vmatpush.bf16.msra.mxu0 %v1633
        %1647 = vmatpush.bf16.msra.mxu0 %v1632
        %1648 = vmatpush.bf16.msra.mxu0 %v1631
        %1649 = vmatpush.bf16.msra.mxu0 %v1630
        %1650 = vmatpush.bf16.msra.mxu0 %v1629
        %1651 = vmatpush.bf16.msra.mxu0 %v1628
        %1652 = vmatmul.bf16.gmra.mxu0 %v745
        %v1653 = vpop.f32.mrf.mxu0
        %v1654 = vadd.f32 %v972, %v1653
        %v1655 = vpop.f32.mrf.mxu0
        %1656 = vdwg.mxu0
        %v1673 = vunpack.c.l.b16 %v922
        %v1674 = vunpack.c.l.b16 %v923
        %v1675 = vunpack.c.l.b16 %v924
        %v1676 = vunpack.c.l.b16 %v925
        %v1677 = vunpack.c.l.b16 %v926
        %v1678 = vunpack.c.l.b16 %v927
        %v1679 = vunpack.c.l.b16 %v928
        %v1680 = vunpack.c.l.b16 %v929
        %v1681 = vunpack.c.l.b16 %v930
        %v1682 = vunpack.c.l.b16 %v931
        %v1683 = vunpack.c.l.b16 %v932
        %v1684 = vunpack.c.l.b16 %v933
        %v1685 = vunpack.c.l.b16 %v934
        %v1686 = vunpack.c.l.b16 %v935
        %v1687 = vunpack.c.l.b16 %v936
        %v1688 = vunpack.c.l.b16 %v937
        %v1689 = vpack.c.b16 %v1674, %v1673
        %v1690 = vpack.c.b16 %v1676, %v1675
        %v1691 = vpack.c.b16 %v1678, %v1677
        %v1692 = vpack.c.b16 %v1680, %v1679
        %v1693 = vpack.c.b16 %v1682, %v1681
        %v1694 = vpack.c.b16 %v1684, %v1683
        %v1695 = vpack.c.b16 %v1686, %v1685
        %v1696 = vpack.c.b16 %v1688, %v1687
        %1705 = vmatpush.bf16.msra.mxu0 %v1696
        %1706 = vmatpush.bf16.msra.mxu0 %v1695
        %1707 = vmatpush.bf16.msra.mxu0 %v1694
        %1708 = vmatpush.bf16.msra.mxu0 %v1693
        %1709 = vmatpush.bf16.msra.mxu0 %v1692
        %1710 = vmatpush.bf16.msra.mxu0 %v1691
        %1711 = vmatpush.bf16.msra.mxu0 %v1690
        %1712 = vmatpush.bf16.msra.mxu0 %v1689
        %1713 = vmatmul.bf16.gmra.mxu0 %v745
        %v1714 = vpop.f32.mrf.mxu0
        %v1715 = vadd.f32 %v973, %v1714
        %v1716 = vpop.f32.mrf.mxu0
        %1717 = vdwg.mxu0
        %v1718 = vpack.c.bf16 %v1044, %v1044
        %v1719 = vpack.c.bf16 %v1105, %v1105
        %v1720 = vpack.c.bf16 %v1166, %v1166
        %v1721 = vpack.c.bf16 %v1227, %v1227
        %v1722 = vpack.c.bf16 %v1288, %v1288
        %v1723 = vpack.c.bf16 %v1349, %v1349
        %v1724 = vpack.c.bf16 %v1410, %v1410
        %v1725 = vpack.c.bf16 %v1471, %v1471
        %vm1726 = vcmask 261120
        %v1728 = vsel %vm1726, %v1718, 0
        %v1731 = vsel %vm1726, %v1722, 0
        %1733 = vmatpush.bf16.xpose.msra.mxu0 0
        %1734 = vmatpush.bf16.xpose.msra.mxu0 0
        %1735 = vmatpush.bf16.xpose.msra.mxu0 0
        %1736 = vmatpush.bf16.xpose.msra.mxu0 0
        %1737 = vmatpush.bf16.xpose.msra.mxu0 0
        %1738 = vmatpush.bf16.xpose.msra.mxu0 0
        %1739 = vmatpush.bf16.xpose.msra.mxu0 0
        %1740 = vmatpush.bf16.xpose.msra.mxu0 %v1731
        %1741 = vmatmul.bf16.gmra.mxu0 %v1728
        %v1742 = vpop.f32.mrf.mxu0
        %v1743 = vadd.f32 0.0, %v1742
        %v1744 = vpop.f32.mrf.mxu0
        %1745 = vdwg.mxu0
        %v1747 = vsel %vm1726, %v1719, 0
        %v1750 = vsel %vm1726, %v1723, 0
        %1752 = vmatpush.bf16.xpose.msra.mxu0 0
        %1753 = vmatpush.bf16.xpose.msra.mxu0 0
        %1754 = vmatpush.bf16.xpose.msra.mxu0 0
        %1755 = vmatpush.bf16.xpose.msra.mxu0 0
        %1756 = vmatpush.bf16.xpose.msra.mxu0 0
        %1757 = vmatpush.bf16.xpose.msra.mxu0 0
        %1758 = vmatpush.bf16.xpose.msra.mxu0 0
        %1759 = vmatpush.bf16.xpose.msra.mxu0 %v1750
        %1760 = vmatmul.bf16.gmra.mxu0 %v1747
        %v1761 = vpop.f32.mrf.mxu0
        %v1762 = vadd.f32 0.0, %v1761
        %v1763 = vpop.f32.mrf.mxu0
        %1764 = vdwg.mxu0
        %v1766 = vsel %vm1726, %v1720, 0
        %v1769 = vsel %vm1726, %v1724, 0
        %1771 = vmatpush.bf16.xpose.msra.mxu0 0
        %1772 = vmatpush.bf16.xpose.msra.mxu0 0
        %1773 = vmatpush.bf16.xpose.msra.mxu0 0
        %1774 = vmatpush.bf16.xpose.msra.mxu0 0
        %1775 = vmatpush.bf16.xpose.msra.mxu0 0
        %1776 = vmatpush.bf16.xpose.msra.mxu0 0
        %1777 = vmatpush.bf16.xpose.msra.mxu0 0
        %1778 = vmatpush.bf16.xpose.msra.mxu0 %v1769
        %1779 = vmatmul.bf16.gmra.mxu0 %v1766
        %v1780 = vpop.f32.mrf.mxu0
        %v1781 = vadd.f32 0.0, %v1780
        %v1782 = vpop.f32.mrf.mxu0
        %1783 = vdwg.mxu0
        %v1785 = vsel %vm1726, %v1721, 0
        %v1788 = vsel %vm1726, %v1725, 0
        %1790 = vmatpush.bf16.xpose.msra.mxu0 0
        %1791 = vmatpush.bf16.xpose.msra.mxu0 0
        %1792 = vmatpush.bf16.xpose.msra.mxu0 0
        %1793 = vmatpush.bf16.xpose.msra.mxu0 0
        %1794 = vmatpush.bf16.xpose.msra.mxu0 0
        %1795 = vmatpush.bf16.xpose.msra.mxu0 0
        %1796 = vmatpush.bf16.xpose.msra.mxu0 0
        %1797 = vmatpush.bf16.xpose.msra.mxu0 %v1788
        %1798 = vmatmul.bf16.gmra.mxu0 %v1785
        %v1799 = vpop.f32.mrf.mxu0
        %v1800 = vadd.f32 0.0, %v1799
        %v1801 = vpop.f32.mrf.mxu0
        %1802 = vdwg.mxu0
        %vm1803 = vcmask 64512
        %v1804 = vsel %vm1803, %v1743, -inf
        %1805 = vmax.xlane.f32.xlu0 %v1804
        %v1806 = vpop.xlane.xlu0 %1805
        %v1807 = vsel %vm1803, %v1762, -inf
        %1808 = vmax.xlane.f32.xlu0 %v1807
        %v1809 = vpop.xlane.xlu0 %1808
        %v1810 = vsel %vm1803, %v1781, -inf
        %1811 = vmax.xlane.f32.xlu0 %v1810
        %v1812 = vpop.xlane.xlu0 %1811
        %v1813 = vsel %vm1803, %v1800, -inf
        %1814 = vmax.xlane.f32.xlu0 %v1813
        %v1815 = vpop.xlane.xlu0 %1814
        %v1816 = vsub.f32 %v1743, %v1806
        %v1817 = vsub.f32 %v1762, %v1809
        %v1818 = vsub.f32 %v1781, %v1812
        %v1819 = vsub.f32 %v1800, %v1815
        %v1820 = vmul.f32 %v1816, 1.442695
        %v1821 = vpow.pop %v1820
        %v1822 = vmul.f32 %v1817, 1.442695
        %v1823 = vpow.pop %v1822
        %v1824 = vmul.f32 %v1818, 1.442695
        %v1825 = vpow.pop %v1824
        %v1826 = vmul.f32 %v1819, 1.442695
        %v1827 = vpow.pop %v1826
        %v1828 = vsel %vm1803, %v1821, 0.0
        %1829 = vadd.xlane.f32.xlu0 %v1828
        %v1830 = vpop.xlane.xlu0 %1829
        %v1831 = vsel %vm1803, %v1823, 0.0
        %1832 = vadd.xlane.f32.xlu0 %v1831
        %v1833 = vpop.xlane.xlu0 %1832
        %v1834 = vsel %vm1803, %v1825, 0.0
        %1835 = vadd.xlane.f32.xlu0 %v1834
        %v1836 = vpop.xlane.xlu0 %1835
        %v1837 = vsel %vm1803, %v1827, 0.0
        %1838 = vadd.xlane.f32.xlu0 %v1837
        %v1839 = vpop.xlane.xlu0 %1838
        %v1840 = vrcp.pop %v1830
        %v1841 = vrcp.pop %v1833
        %v1842 = vrcp.pop %v1836
        %v1843 = vrcp.pop %v1839
        %v1844 = vmul.f32 %v1821, %v1840
        %v1845 = vmul.f32 %v1823, %v1841
        %v1846 = vmul.f32 %v1825, %v1842
        %v1847 = vmul.f32 %v1827, %v1843
        %v1848 = vpack.c.bf16 %v1844, %v1844
        %v1849 = vpack.c.bf16 %v1845, %v1845
        %v1850 = vpack.c.bf16 %v1846, %v1846
        %v1851 = vpack.c.bf16 %v1847, %v1847
        %v1852 = vpack.c.bf16 %v1532, %v1532
        %v1853 = vpack.c.bf16 %v1593, %v1593
        %v1854 = vpack.c.bf16 %v1654, %v1654
        %v1855 = vpack.c.bf16 %v1715, %v1715
        %v1857 = vsel %vm1803, %v1848, 0
        %vm1859 = vcmask 1043456
        %v1861 = vsel %vm1859, %v1852, 0
        %1863 = vmatpush.bf16.msra.mxu0 0
        %1864 = vmatpush.bf16.msra.mxu0 0
        %1865 = vmatpush.bf16.msra.mxu0 0
        %1866 = vmatpush.bf16.msra.mxu0 0
        %1867 = vmatpush.bf16.msra.mxu0 0
        %1868 = vmatpush.bf16.msra.mxu0 0
        %1869 = vmatpush.bf16.msra.mxu0 0
        %1870 = vmatpush.bf16.msra.mxu0 %v1861
        %1871 = vmatmul.bf16.gmra.mxu0 %v1857
        %v1872 = vpop.f32.mrf.mxu0
        %v1873 = vadd.f32 0.0, %v1872
        %v1874 = vpop.f32.mrf.mxu0
        %1875 = vdwg.mxu0
        %v1877 = vsel %vm1803, %v1849, 0
        %v1880 = vsel %vm1859, %v1853, 0
        %1882 = vmatpush.bf16.msra.mxu0 0
        %1883 = vmatpush.bf16.msra.mxu0 0
        %1884 = vmatpush.bf16.msra.mxu0 0
        %1885 = vmatpush.bf16.msra.mxu0 0
        %1886 = vmatpush.bf16.msra.mxu0 0
        %1887 = vmatpush.bf16.msra.mxu0 0
        %1888 = vmatpush.bf16.msra.mxu0 0
        %1889 = vmatpush.bf16.msra.mxu0 %v1880
        %1890 = vmatmul.bf16.gmra.mxu0 %v1877
        %v1891 = vpop.f32.mrf.mxu0
        %v1892 = vadd.f32 0.0, %v1891
        %v1893 = vpop.f32.mrf.mxu0
        %1894 = vdwg.mxu0
        %v1896 = vsel %vm1803, %v1850, 0
        %v1899 = vsel %vm1859, %v1854, 0
        %1901 = vmatpush.bf16.msra.mxu0 0
        %1902 = vmatpush.bf16.msra.mxu0 0
        %1903 = vmatpush.bf16.msra.mxu0 0
        %1904 = vmatpush.bf16.msra.mxu0 0
        %1905 = vmatpush.bf16.msra.mxu0 0
        %1906 = vmatpush.bf16.msra.mxu0 0
        %1907 = vmatpush.bf16.msra.mxu0 0
        %1908 = vmatpush.bf16.msra.mxu0 %v1899
        %1909 = vmatmul.bf16.gmra.mxu0 %v1896
        %v1910 = vpop.f32.mrf.mxu0
        %v1911 = vadd.f32 0.0, %v1910
        %v1912 = vpop.f32.mrf.mxu0
        %1913 = vdwg.mxu0
        %v1915 = vsel %vm1803, %v1851, 0
        %v1918 = vsel %vm1859, %v1855, 0
        %1920 = vmatpush.bf16.msra.mxu0 0
        %1921 = vmatpush.bf16.msra.mxu0 0
        %1922 = vmatpush.bf16.msra.mxu0 0
        %1923 = vmatpush.bf16.msra.mxu0 0
        %1924 = vmatpush.bf16.msra.mxu0 0
        %1925 = vmatpush.bf16.msra.mxu0 0
        %1926 = vmatpush.bf16.msra.mxu0 0
        %1927 = vmatpush.bf16.msra.mxu0 %v1918
        %1928 = vmatmul.bf16.gmra.mxu0 %v1915
        %v1929 = vpop.f32.mrf.mxu0
        %v1930 = vadd.f32 0.0, %v1929
        %v1931 = vpop.f32.mrf.mxu0
        %1932 = vdwg.mxu0
        %v1933 = vpack.c.bf16 %v1873, %v1873
        %v1934 = vpack.c.bf16 %v1892, %v1892
        %v1935 = vpack.c.bf16 %v1911, %v1911
        %v1936 = vpack.c.bf16 %v1930, %v1930
        %v1937 = vld [vmem:[%s667] sm:$0xf]
        %v1938 = vld [vmem:[%s667 + $0x4] sm:$0xf]
        %v1939 = vld [vmem:[%s667 + $0x8] sm:$0xf]
        %v1940 = vld [vmem:[%s667 + $0xc] sm:$0xf]
        %v1941 = vld [vmem:[%s667 + $0x10] sm:$0xf]
        %v1942 = vld [vmem:[%s667 + $0x14] sm:$0xf]
        %v1943 = vld [vmem:[%s667 + $0x18] sm:$0xf]
        %v1944 = vld [vmem:[%s667 + $0x1c] sm:$0xf]
        %v1945 = vld [vmem:[%s667 + $0x20] sm:$0xf]
        %v1946 = vld [vmem:[%s667 + $0x24] sm:$0xf]
        %v1947 = vld [vmem:[%s667 + $0x28] sm:$0xf]
        %v1948 = vld [vmem:[%s667 + $0x2c] sm:$0xf]
        %v1949 = vld [vmem:[%s667 + $0x30] sm:$0xf]
        %v1950 = vld [vmem:[%s667 + $0x34] sm:$0xf]
        %v1951 = vld [vmem:[%s667 + $0x38] sm:$0xf]
        %v1952 = vld [vmem:[%s667 + $0x3c] sm:$0xf]
        %v1957 = vunpack.c.l.b16 %v1937
        %v1958 = vunpack.c.l.b16 %v1938
        %v1959 = vunpack.c.l.b16 %v1939
        %v1960 = vunpack.c.l.b16 %v1940
        %v1961 = vpack.c.b16 %v1958, %v1957
        %v1962 = vpack.c.b16 %v1960, %v1959
        %v1966 = vsel %vm1726, %v1933, 0
        %1968 = vmatpush.bf16.msra.mxu0 0
        %1969 = vmatpush.bf16.msra.mxu0 0
        %1970 = vmatpush.bf16.msra.mxu0 0
        %1971 = vmatpush.bf16.msra.mxu0 0
        %1972 = vmatpush.bf16.msra.mxu0 0
        %1973 = vmatpush.bf16.msra.mxu0 0
        %1974 = vmatpush.bf16.msra.mxu0 %v1962
        %1975 = vmatpush.bf16.msra.mxu0 %v1961
        %1976 = vmatmul.bf16.gmra.mxu0 %v1966
        %v1977 = vpop.f32.mrf.mxu0
        %v1978 = vadd.f32 0.0, %v1977
        %v1979 = vpop.f32.mrf.mxu0
        %1980 = vdwg.mxu0
        %v1985 = vunpack.c.l.b16 %v1941
        %v1986 = vunpack.c.l.b16 %v1942
        %v1987 = vunpack.c.l.b16 %v1943
        %v1988 = vunpack.c.l.b16 %v1944
        %v1989 = vpack.c.b16 %v1986, %v1985
        %v1990 = vpack.c.b16 %v1988, %v1987
        %v1994 = vsel %vm1726, %v1934, 0
        %1996 = vmatpush.bf16.msra.mxu0 0
        %1997 = vmatpush.bf16.msra.mxu0 0
        %1998 = vmatpush.bf16.msra.mxu0 0
        %1999 = vmatpush.bf16.msra.mxu0 0
        %2000 = vmatpush.bf16.msra.mxu0 0
        %2001 = vmatpush.bf16.msra.mxu0 0
        %2002 = vmatpush.bf16.msra.mxu0 %v1990
        %2003 = vmatpush.bf16.msra.mxu0 %v1989
        %2004 = vmatmul.bf16.gmra.mxu0 %v1994
        %v2005 = vpop.f32.mrf.mxu0
        %v2006 = vadd.f32 0.0, %v2005
        %v2007 = vpop.f32.mrf.mxu0
        %2008 = vdwg.mxu0
        %v2013 = vunpack.c.l.b16 %v1945
        %v2014 = vunpack.c.l.b16 %v1946
        %v2015 = vunpack.c.l.b16 %v1947
        %v2016 = vunpack.c.l.b16 %v1948
        %v2017 = vpack.c.b16 %v2014, %v2013
        %v2018 = vpack.c.b16 %v2016, %v2015
        %v2022 = vsel %vm1726, %v1935, 0
        %2024 = vmatpush.bf16.msra.mxu0 0
        %2025 = vmatpush.bf16.msra.mxu0 0
        %2026 = vmatpush.bf16.msra.mxu0 0
        %2027 = vmatpush.bf16.msra.mxu0 0
        %2028 = vmatpush.bf16.msra.mxu0 0
        %2029 = vmatpush.bf16.msra.mxu0 0
        %2030 = vmatpush.bf16.msra.mxu0 %v2018
        %2031 = vmatpush.bf16.msra.mxu0 %v2017
        %2032 = vmatmul.bf16.gmra.mxu0 %v2022
        %v2033 = vpop.f32.mrf.mxu0
        %v2034 = vadd.f32 0.0, %v2033
        %v2035 = vpop.f32.mrf.mxu0
        %2036 = vdwg.mxu0
        %v2041 = vunpack.c.l.b16 %v1949
        %v2042 = vunpack.c.l.b16 %v1950
        %v2043 = vunpack.c.l.b16 %v1951
        %v2044 = vunpack.c.l.b16 %v1952
        %v2045 = vpack.c.b16 %v2042, %v2041
        %v2046 = vpack.c.b16 %v2044, %v2043
        %v2050 = vsel %vm1726, %v1936, 0
        %2052 = vmatpush.bf16.msra.mxu0 0
        %2053 = vmatpush.bf16.msra.mxu0 0
        %2054 = vmatpush.bf16.msra.mxu0 0
        %2055 = vmatpush.bf16.msra.mxu0 0
        %2056 = vmatpush.bf16.msra.mxu0 0
        %2057 = vmatpush.bf16.msra.mxu0 0
        %2058 = vmatpush.bf16.msra.mxu0 %v2046
        %2059 = vmatpush.bf16.msra.mxu0 %v2045
        %2060 = vmatmul.bf16.gmra.mxu0 %v2050
        %v2061 = vpop.f32.mrf.mxu0
        %v2062 = vadd.f32 0.0, %v2061
        %v2063 = vpop.f32.mrf.mxu0
        %2064 = vdwg.mxu0
        %v2065 = vadd.f32 %v1978, %v2006
        %v2066 = vadd.f32 %v2065, %v2034
        %v2067 = vadd.f32 %v2066, %v2062
        %v2068 = vld [vmem:[%s670] sm:$0x1]
        %v2070 = vperm.slane %v2068, 0
        %v2072 = vadd.f32 %v2067, %v2070
        %v2073 = vadd.f32 %v744, %v2072
        %v2074 = vld [vmem:[%s673] sm:$0x1]
        %v2075 = vld [vmem:[%s676] sm:$0x1]
        %2076 = vadd.xlane.f32.xlu0 %v2073
        %v2077 = vpop.xlane.xlu0 %2076
        %v2078 = vrcp.pop 128.0
        %v2079 = vmul.f32 128.0, %v2078
        %v2080 = vsub.f32 1.0, %v2079
        %v2081 = vmul.f32 %v2078, %v2080
        %v2082 = vadd.f32 %v2078, %v2081
        %vm2083 = vweird.f32 %v2078
        %v2084 = vsel %vm2083, %v2078, %v2082
        %v2085 = vmul.f32 %v2077, %v2084
        %v2086 = vsub.f32 %v2073, %v2085
        %v2087 = vmul.f32 %v2086, %v2086
        %2088 = vadd.xlane.f32.xlu0 %v2087
        %v2089 = vpop.xlane.xlu0 %2088
        %v2090 = vmul.f32 %v2089, %v2084
        %v2091 = vadd.f32 %v2090, 1e-12
        %v2092 = vrsqrt.pop %v2091
        %v2093 = vmul.f32 %v2092, %v2091
        %v2094 = vmul.f32 %v2093, %v2092
        %v2095 = vmul.f32 0.5, %v2094
        %v2096 = vsub.f32 1.5, %v2095
        %v2097 = vmul.f32 %v2092, %v2096
        %vm2098 = vweird.f32 %v2091
        %vm2099 = vweird.f32 %v2092
        %vm2100 = vmor %vm2098, %vm2099
        %v2101 = vsel %vm2100, %v2092, %v2097
        %v2102 = vmul.f32 %v2086, %v2101
        %v2104 = vperm.slane %v2074, 0
        %v2106 = vmul.f32 %v2102, %v2104
        %v2108 = vperm.slane %v2075, 0
        %v2110 = vadd.f32 %v2106, %v2108
        %v2111 = vpack.c.bf16 %v2110, %v2110
        %v2112 = vld [vmem:[%s681] sm:$0xff]
        %v2113 = vld [vmem:[%s681 + $0x8] sm:$0xff]
        %v2114 = vld [vmem:[%s681 + $0x10] sm:$0xff]
        %v2115 = vld [vmem:[%s681 + $0x18] sm:$0xff]
        %v2116 = vld [vmem:[%s681 + $0x20] sm:$0xff]
        %v2117 = vld [vmem:[%s681 + $0x28] sm:$0xff]
        %v2118 = vld [vmem:[%s681 + $0x30] sm:$0xff]
        %v2119 = vld [vmem:[%s681 + $0x38] sm:$0xff]
        %v2120 = vld [vmem:[%s681 + $0x40] sm:$0xff]
        %v2121 = vld [vmem:[%s681 + $0x48] sm:$0xff]
        %v2122 = vld [vmem:[%s681 + $0x50] sm:$0xff]
        %v2123 = vld [vmem:[%s681 + $0x58] sm:$0xff]
        %v2124 = vld [vmem:[%s681 + $0x60] sm:$0xff]
        %v2125 = vld [vmem:[%s681 + $0x68] sm:$0xff]
        %v2126 = vld [vmem:[%s681 + $0x70] sm:$0xff]
        %v2127 = vld [vmem:[%s681 + $0x78] sm:$0xff]
        %v2128 = vld [vmem:[%s685] sm:$0x3]
        %v2130 = vperm.slane %v2128, 0
        %v2131 = vperm.slane %v2128, 1
        %v2150 = vunpack.c.l.b16 %v2112
        %v2151 = vunpack.c.h.b16 %v2112
        %v2152 = vunpack.c.l.b16 %v2113
        %v2153 = vunpack.c.h.b16 %v2113
        %v2154 = vunpack.c.l.b16 %v2114
        %v2155 = vunpack.c.h.b16 %v2114
        %v2156 = vunpack.c.l.b16 %v2115
        %v2157 = vunpack.c.h.b16 %v2115
        %v2158 = vunpack.c.l.b16 %v2116
        %v2159 = vunpack.c.h.b16 %v2116
        %v2160 = vunpack.c.l.b16 %v2117
        %v2161 = vunpack.c.h.b16 %v2117
        %v2162 = vunpack.c.l.b16 %v2118
        %v2163 = vunpack.c.h.b16 %v2118
        %v2164 = vunpack.c.l.b16 %v2119
        %v2165 = vunpack.c.h.b16 %v2119
        %v2166 = vunpack.c.l.b16 %v2120
        %v2167 = vunpack.c.h.b16 %v2120
        %v2168 = vunpack.c.l.b16 %v2121
        %v2169 = vunpack.c.h.b16 %v2121
        %v2170 = vunpack.c.l.b16 %v2122
        %v2171 = vunpack.c.h.b16 %v2122
        %v2172 = vunpack.c.l.b16 %v2123
        %v2173 = vunpack.c.h.b16 %v2123
        %v2174 = vunpack.c.l.b16 %v2124
        %v2175 = vunpack.c.h.b16 %v2124
        %v2176 = vunpack.c.l.b16 %v2125
        %v2177 = vunpack.c.h.b16 %v2125
        %v2178 = vunpack.c.l.b16 %v2126
        %v2179 = vunpack.c.h.b16 %v2126
        %v2180 = vunpack.c.l.b16 %v2127
        %v2181 = vunpack.c.h.b16 %v2127
        %v2182 = vpack.c.b16 %v2152, %v2150
        %v2183 = vpack.c.b16 %v2153, %v2151
        %v2184 = vpack.c.b16 %v2156, %v2154
        %v2185 = vpack.c.b16 %v2157, %v2155
        %v2186 = vpack.c.b16 %v2160, %v2158
        %v2187 = vpack.c.b16 %v2161, %v2159
        %v2188 = vpack.c.b16 %v2164, %v2162
        %v2189 = vpack.c.b16 %v2165, %v2163
        %v2190 = vpack.c.b16 %v2168, %v2166
        %v2191 = vpack.c.b16 %v2169, %v2167
        %v2192 = vpack.c.b16 %v2172, %v2170
        %v2193 = vpack.c.b16 %v2173, %v2171
        %v2194 = vpack.c.b16 %v2176, %v2174
        %v2195 = vpack.c.b16 %v2177, %v2175
        %v2196 = vpack.c.b16 %v2180, %v2178
        %v2197 = vpack.c.b16 %v2181, %v2179
        %2214 = vmatpush.bf16.msra.mxu0 %v2196
        %2215 = vmatpush.bf16.msra.mxu0 %v2194
        %2216 = vmatpush.bf16.msra.mxu0 %v2192
        %2217 = vmatpush.bf16.msra.mxu0 %v2190
        %2218 = vmatpush.bf16.msra.mxu0 %v2188
        %2219 = vmatpush.bf16.msra.mxu0 %v2186
        %2220 = vmatpush.bf16.msra.mxu0 %v2184
        %2221 = vmatpush.bf16.msra.mxu0 %v2182
        %2222 = vmatmul.bf16.gmra.mxu0 %v2111
        %v2223 = vpop.f32.mrf.mxu0
        %v2224 = vadd.f32 %v2130, %v2223
        %v2225 = vpop.f32.mrf.mxu0
        %2226 = vdwg.mxu0
        %2227 = vmatpush.bf16.msra.mxu0 %v2197
        %2228 = vmatpush.bf16.msra.mxu0 %v2195
        %2229 = vmatpush.bf16.msra.mxu0 %v2193
        %2230 = vmatpush.bf16.msra.mxu0 %v2191
        %2231 = vmatpush.bf16.msra.mxu0 %v2189
        %2232 = vmatpush.bf16.msra.mxu0 %v2187
        %2233 = vmatpush.bf16.msra.mxu0 %v2185
        %2234 = vmatpush.bf16.msra.mxu0 %v2183
        %2235 = vmatmul.bf16.gmra.mxu0 %v2111
        %v2236 = vpop.f32.mrf.mxu0
        %v2237 = vadd.f32 %v2131, %v2236
        %v2238 = vpop.f32.mrf.mxu0
        %2239 = vdwg.mxu0
        %v2240 = vmul.f32 %v2224, 0.5
        %v2241 = vmul.f32 %v2237, 0.5
        %v2242 = vmul.f32 %v2224, 0.044715
        %v2243 = vmul.f32 %v2237, 0.044715
        %v2244 = vmul.f32 %v2242, %v2224
        %v2245 = vmul.f32 %v2243, %v2237
        %v2246 = vmul.f32 %v2244, %v2224
        %v2247 = vmul.f32 %v2245, %v2237
        %v2248 = vadd.f32 %v2224, %v2246
        %v2249 = vadd.f32 %v2237, %v2247
        %v2250 = vmul.f32 %v2248, 0.7978846
        %v2251 = vmul.f32 %v2249, 0.7978846
        %v2252 = vtanh.pop %v2250
        %v2253 = vtanh.pop %v2251
        %v2254 = vadd.f32 %v2252, 1.0
        %v2255 = vadd.f32 %v2253, 1.0
        %v2256 = vmul.f32 %v2240, %v2254
        %v2257 = vmul.f32 %v2241, %v2255
        %v2258 = vpack.c.bf16 %v2256, %v2256
        %v2259 = vpack.c.bf16 %v2257, %v2257
        %v2260 = vld [vmem:[%s690] sm:$0xf]
        %v2261 = vld [vmem:[%s690 + $0x4] sm:$0xf]
        %v2262 = vld [vmem:[%s690 + $0x8] sm:$0xf]
        %v2263 = vld [vmem:[%s690 + $0xc] sm:$0xf]
        %v2264 = vld [vmem:[%s690 + $0x10] sm:$0xf]
        %v2265 = vld [vmem:[%s690 + $0x14] sm:$0xf]
        %v2266 = vld [vmem:[%s690 + $0x18] sm:$0xf]
        %v2267 = vld [vmem:[%s690 + $0x1c] sm:$0xf]
        %v2268 = vld [vmem:[%s690 + $0x20] sm:$0xf]
        %v2269 = vld [vmem:[%s690 + $0x24] sm:$0xf]
        %v2270 = vld [vmem:[%s690 + $0x28] sm:$0xf]
        %v2271 = vld [vmem:[%s690 + $0x2c] sm:$0xf]
        %v2272 = vld [vmem:[%s690 + $0x30] sm:$0xf]
        %v2273 = vld [vmem:[%s690 + $0x34] sm:$0xf]
        %v2274 = vld [vmem:[%s690 + $0x38] sm:$0xf]
        %v2275 = vld [vmem:[%s690 + $0x3c] sm:$0xf]
        %v2276 = vld [vmem:[%s690 + $0x40] sm:$0xf]
        %v2277 = vld [vmem:[%s690 + $0x44] sm:$0xf]
        %v2278 = vld [vmem:[%s690 + $0x48] sm:$0xf]
        %v2279 = vld [vmem:[%s690 + $0x4c] sm:$0xf]
        %v2280 = vld [vmem:[%s690 + $0x50] sm:$0xf]
        %v2281 = vld [vmem:[%s690 + $0x54] sm:$0xf]
        %v2282 = vld [vmem:[%s690 + $0x58] sm:$0xf]
        %v2283 = vld [vmem:[%s690 + $0x5c] sm:$0xf]
        %v2284 = vld [vmem:[%s690 + $0x60] sm:$0xf]
        %v2285 = vld [vmem:[%s690 + $0x64] sm:$0xf]
        %v2286 = vld [vmem:[%s690 + $0x68] sm:$0xf]
        %v2287 = vld [vmem:[%s690 + $0x6c] sm:$0xf]
        %v2288 = vld [vmem:[%s690 + $0x70] sm:$0xf]
        %v2289 = vld [vmem:[%s690 + $0x74] sm:$0xf]
        %v2290 = vld [vmem:[%s690 + $0x78] sm:$0xf]
        %v2291 = vld [vmem:[%s690 + $0x7c] sm:$0xf]
        %v2292 = vld [vmem:[%s693] sm:$0x1]
        %v2294 = vperm.slane %v2292, 0
        %v2328 = vunpack.c.l.b16 %v2260
        %v2329 = vunpack.c.l.b16 %v2261
        %v2330 = vunpack.c.l.b16 %v2262
        %v2331 = vunpack.c.l.b16 %v2263
        %v2332 = vunpack.c.l.b16 %v2264
        %v2333 = vunpack.c.l.b16 %v2265
        %v2334 = vunpack.c.l.b16 %v2266
        %v2335 = vunpack.c.l.b16 %v2267
        %v2336 = vunpack.c.l.b16 %v2268
        %v2337 = vunpack.c.l.b16 %v2269
        %v2338 = vunpack.c.l.b16 %v2270
        %v2339 = vunpack.c.l.b16 %v2271
        %v2340 = vunpack.c.l.b16 %v2272
        %v2341 = vunpack.c.l.b16 %v2273
        %v2342 = vunpack.c.l.b16 %v2274
        %v2343 = vunpack.c.l.b16 %v2275
        %v2344 = vunpack.c.l.b16 %v2276
        %v2345 = vunpack.c.l.b16 %v2277
        %v2346 = vunpack.c.l.b16 %v2278
        %v2347 = vunpack.c.l.b16 %v2279
        %v2348 = vunpack.c.l.b16 %v2280
        %v2349 = vunpack.c.l.b16 %v2281
        %v2350 = vunpack.c.l.b16 %v2282
        %v2351 = vunpack.c.l.b16 %v2283
        %v2352 = vunpack.c.l.b16 %v2284
        %v2353 = vunpack.c.l.b16 %v2285
        %v2354 = vunpack.c.l.b16 %v2286
        %v2355 = vunpack.c.l.b16 %v2287
        %v2356 = vunpack.c.l.b16 %v2288
        %v2357 = vunpack.c.l.b16 %v2289
        %v2358 = vunpack.c.l.b16 %v2290
        %v2359 = vunpack.c.l.b16 %v2291
        %v2360 = vpack.c.b16 %v2329, %v2328
        %v2361 = vpack.c.b16 %v2331, %v2330
        %v2362 = vpack.c.b16 %v2333, %v2332
        %v2363 = vpack.c.b16 %v2335, %v2334
        %v2364 = vpack.c.b16 %v2337, %v2336
        %v2365 = vpack.c.b16 %v2339, %v2338
        %v2366 = vpack.c.b16 %v2341, %v2340
        %v2367 = vpack.c.b16 %v2343, %v2342
        %v2368 = vpack.c.b16 %v2345, %v2344
        %v2369 = vpack.c.b16 %v2347, %v2346
        %v2370 = vpack.c.b16 %v2349, %v2348
        %v2371 = vpack.c.b16 %v2351, %v2350
        %v2372 = vpack.c.b16 %v2353, %v2352
        %v2373 = vpack.c.b16 %v2355, %v2354
        %v2374 = vpack.c.b16 %v2357, %v2356
        %v2375 = vpack.c.b16 %v2359, %v2358
        %2392 = vmatpush.bf16.msra.mxu0 %v2367
        %2393 = vmatpush.bf16.msra.mxu0 %v2366
        %2394 = vmatpush.bf16.msra.mxu0 %v2365
        %2395 = vmatpush.bf16.msra.mxu0 %v2364
        %2396 = vmatpush.bf16.msra.mxu0 %v2363
        %2397 = vmatpush.bf16.msra.mxu0 %v2362
        %2398 = vmatpush.bf16.msra.mxu0 %v2361
        %2399 = vmatpush.bf16.msra.mxu0 %v2360
        %2400 = vmatmul.bf16.gmra.mxu0 %v2258
        %v2401 = vpop.f32.mrf.mxu0
        %v2402 = vadd.f32 %v2294, %v2401
        %v2403 = vpop.f32.mrf.mxu0
        %2404 = vdwg.mxu0
        %2405 = vmatpush.bf16.msra.mxu0 %v2375
        %2406 = vmatpush.bf16.msra.mxu0 %v2374
        %2407 = vmatpush.bf16.msra.mxu0 %v2373
        %2408 = vmatpush.bf16.msra.mxu0 %v2372
        %2409 = vmatpush.bf16.msra.mxu0 %v2371
        %2410 = vmatpush.bf16.msra.mxu0 %v2370
        %2411 = vmatpush.bf16.msra.mxu0 %v2369
        %2412 = vmatpush.bf16.msra.mxu0 %v2368
        %2413 = vmatmul.bf16.gmra.mxu0 %v2259
        %v2414 = vpop.f32.mrf.mxu0
        %v2415 = vadd.f32 %v2402, %v2414
        %v2416 = vpop.f32.mrf.mxu0
        %2417 = vdwg.mxu0
        %v2418 = vadd.f32 %v2110, %v2415
        %v2419 = vld [vmem:[%s696] sm:$0x1]
        %v2420 = vld [vmem:[%s699] sm:$0x1]
        %2421 = vadd.xlane.f32.xlu0 %v2418
        %v2422 = vpop.xlane.xlu0 %2421
        %v2423 = vmul.f32 %v2422, %v2084
        %v2424 = vsub.f32 %v2418, %v2423
        %v2425 = vmul.f32 %v2424, %v2424
        %2426 = vadd.xlane.f32.xlu0 %v2425
        %v2427 = vpop.xlane.xlu0 %2426
        %v2428 = vmul.f32 %v2427, %v2084
        %v2429 = vadd.f32 %v2428, 1e-12
        %v2430 = vrsqrt.pop %v2429
        %v2431 = vmul.f32 %v2430, %v2429
        %v2432 = vmul.f32 %v2431, %v2430
        %v2433 = vmul.f32 0.5, %v2432
        %v2434 = vsub.f32 1.5, %v2433
        %v2435 = vmul.f32 %v2430, %v2434
        %vm2436 = vweird.f32 %v2429
        %vm2437 = vweird.f32 %v2430
        %vm2438 = vmor %vm2436, %vm2437
        %v2439 = vsel %vm2438, %v2430, %v2435
        %v2440 = vmul.f32 %v2424, %v2439
        %v2442 = vperm.slane %v2419, 0
        %v2444 = vmul.f32 %v2440, %v2442
        %v2446 = vperm.slane %v2420, 0
        %v2448 = vadd.f32 %v2444, %v2446
        %2449 = vst [vmem:[#allocation2] sm:$0xff] %v2448
        %p2450 = scmp.eq.s32.totalorder %s34, 1
        // Predicated region
        $region85: #{tpu_custom_call.1} parent=79 // pred_check
          %p2451 = pneg %p2450
        $region86: #{tpu_custom_call.1} parent=79 // pred_check_branch
          %2453 = sbr.rel (%p2451) target = $region88
        $region87: #{tpu_custom_call.1} parent=79 // pred_region
          %2454 = vst [vmem:[%s649] sm:$0xff] %v2448
        $region88: #{tpu_custom_call.1} parent=79 // pred_fallthru
          _
        %s2455 = sand.u32 %s429, 1
        %s2456 = scalar_lea.sflag [#allocation4], %s2455
        %s2457 = sand.u32 %s429, 1
        %s2458 = smul.addr %s2457, 8
        %s2459 = scalar_lea.vmem [#allocation3], %s2458
        // Predicated region
        $region89: #{tpu_custom_call.1} parent=79 // pred_check
          %p2460 = pneg %p439
        $region90: #{tpu_custom_call.1} parent=79 // pred_check_branch
          %2462 = sbr.rel (%p2460) target = $region92
        $region91: #{tpu_custom_call.1} parent=79 // pred_region
          %2464 = vsyncadd %s2456, 0
          %s2465 = smul.addr %s33, 8
          %s2466 = scalar_lea.hbm %s15, %s2465
          %s2468 = sshll.u32 %s2459, 4
          %s2469 = int_to_ptr.vmem [resolvable:$true] %s2468
          %s2470 = sshll.u32 %s2466, 4
          %s2471 = int_to_ptr.hbm [resolvable:$true] %s2470
          %2473 = dma.vmem_to_hbm [thread:$0]  %s2469, 128, %s2471, %s2456
        $region92: #{tpu_custom_call.1} parent=79 // pred_fallthru
          _
      $region80: #{tpu_custom_call.1} parent=5 // pred_fallthru
        _
      %p2474 = scmp.le.s32.totalorder 2, %s24
      // Predicated region
      $region93: #{tpu_custom_call.1} parent=5 // pred_check
        %p2475 = pneg %p2474
      $region94: #{tpu_custom_call.1} parent=5 // pred_check_branch
        %2477 = sbr.rel (%p2475) target = $region96
      $region95: #{tpu_custom_call.1} parent=5 // pred_region
        %s2478 = ssub.s32 %s24, 2
        // Predicated region
        $region97: #{tpu_custom_call.1} parent=95 // pred_check
          %p2479 = pneg %p445
        $region98: #{tpu_custom_call.1} parent=95 // pred_check_branch
          %2481 = sbr.rel (%p2479) target = $region100
        $region99: #{tpu_custom_call.1} parent=95 // pred_region
          %s2482 = sand.u32 %s430, 1
          %s2483 = scalar_lea.sflag [#allocation4], %s2482
          %s2484 = sand.u32 %s430, 1
          %s2485 = smul.addr %s2484, 8
          %s2486 = scalar_lea.vmem [#allocation3], %s2485
          %2488 = dma.done %s2483, 128
        $region100: #{tpu_custom_call.1} parent=95 // pred_fallthru
          _
      $region96: #{tpu_custom_call.1} parent=5 // pred_fallthru
        _
    $region6: #{tpu_custom_call.1} parent=1 // loop_footer
      %s28 = sadd.s32 1, %s24
    $region7: #{tpu_custom_call.1} parent=1 // loop_footer_branch
      %23 = sbr.rel target = $region3
    $region8: #{tpu_custom_call.1} parent=1 // loop_exit
      _
    %2489 = vsyncpa [#allocation4], 1
    %s2490 = scalar_lea.sflag [#allocation4], 1
    %2491 = vsyncpa %s2490, 1

</llo_original>
